<compile_context>
chip_gen: v5e
topology: v5e:2x2
jax: 0.10.0
libtpu: 0.0.40
codegen_flags: <defaults>
</compile_context>

<pallas_src>
import math
import jax
import jax.numpy as jnp
from jax.experimental import pallas as pl
from jax.experimental.pallas import tpu as pltpu

# ----------------------------- model config ---------------------------------
VOCAB = 50          # synthetic vocab (real roberta-base: 50265)
MAX_POS = 64        # must satisfy S + PAD_IDX < MAX_POS
TYPE_VOCAB = 2
D = 128             # hidden size (real: 768) -- lane aligned
H = 4               # attention heads (real: 12)
DH = D // H
FFN = 256           # intermediate size (real: 3072)
LAYERS = 2          # encoder layers (real: 12)
EPS = 1e-5
PAD_IDX = 1         # RoBERTa padding token id


# ----------------------------- shared helpers --------------------------------
def _layernorm(x, g, b, eps=EPS):
    mu = jnp.mean(x, axis=-1, keepdims=True)
    var = jnp.mean((x - mu) ** 2, axis=-1, keepdims=True)
    return (x - mu) * jax.lax.rsqrt(var + eps) * g + b


def _gelu(x):
    # TODO(synk): HF RoBERTa uses exact erf-GELU; tanh approximation keeps the
    # op on the EUP and guarantees Mosaic lowering (<1e-3 relative difference).
    return jax.nn.gelu(x, approximate=True)


# --------------------------- stacked encoder kernel ---------------------------
def make_encoder_stack_kernel(BB, S):
    T = BB * S   # rows handled per grid point (batch block folded into M)

    def kernel(x0_ref, bias_ref,
               wqkv_ref, bqkv_ref, wo_ref, bo_ref,
               ln1g_ref, ln1b_ref, w1_ref, b1_ref,
               w2_ref, b2_ref, ln2g_ref, ln2b_ref,
               x_ref):
        layer = pl.program_id(1)

        # Initialize this batch-block's resident bf16 activation slab once;
        # afterwards x_ref (output block, constant index over layers) carries
        # the activations in VMEM across all layers.
        @pl.when(layer == 0)
        def _():
            x_ref[...] = x0_ref[...]

        xb = x_ref[...]                                    # (T, D) bf16

        # Fused QKV projection on the whole slab; the 1/sqrt(DH) softmax scale
        # is already folded into the Q columns of wqkv (host-side, at init).
        qkv = jnp.dot(xb, wqkv_ref[0],
                      preferred_element_type=jnp.float32) + bqkv_ref[0]
        qkv = qkv.astype(jnp.bfloat16)
        q = qkv[:, 0:D]
        k = qkv[:, D:2 * D]
        v = qkv[:, 2 * D:3 * D]

        # ---------------- head-batched attention (no per-head matmuls) -------
        # Split heads once into a (BB*H, S, DH) batch using static, aligned
        # lane/row slices (reliably lowering), then do ONE batched score
        # einsum and ONE batched context einsum.
        def split_heads(m):                                # (T, D)->(BB*H,S,DH)
            return jnp.stack(
                [m[b * S:(b + 1) * S, h * DH:(h + 1) * DH]
                 for b in range(BB) for h in range(H)], axis=0)

        qh = split_heads(q)
        kh = split_heads(k)
        vh = split_heads(v)
        bias = jnp.stack(                                  # (BB*H, 1, S)
            [bias_ref[b] for b in range(BB) for _ in range(H)], axis=0)

        s = jnp.einsum('bqd,bkd->bqk', qh, kh,
                       preferred_element_type=jnp.float32) + bias
        s = s - jnp.max(s, axis=-1, keepdims=True)
        p = jnp.exp(s)
        # TODO(synk): approx reciprocal (EUP slot) differs from exact division
        # by ~1e-5 relative; use approx=False when validating vs PyTorch.
        p = p * pl.reciprocal(jnp.sum(p, axis=-1, keepdims=True), approx=True)
        ctx_h = jnp.einsum('bqk,bkd->bqd', p.astype(jnp.bfloat16), vh,
                           preferred_element_type=jnp.float32
                           ).astype(jnp.bfloat16)          # (BB*H, S, DH)

        # Merge heads back into one lane-dense (T, 128) slab feeding Wo
        # (single lane concat; no masked stripe stores into scratch).
        ctx = jnp.concatenate(
            [jnp.concatenate([ctx_h[b * H + h] for h in range(H)], axis=-1)
             for b in range(BB)], axis=0)                  # (T, D) bf16

        attn = jnp.dot(ctx, wo_ref[0],
                       preferred_element_type=jnp.float32) + bo_ref[0]

        x_f32 = xb.astype(jnp.float32)
        h1 = _layernorm(x_f32 + attn, ln1g_ref[0], ln1b_ref[0])

        # TODO(synk): tile the FFN over rows / N at real shapes (see header).
        inter = _gelu(jnp.dot(h1.astype(jnp.bfloat16), w1_ref[0],
                              preferred_element_type=jnp.float32) + b1_ref[0])
        ffn = jnp.dot(inter.astype(jnp.bfloat16), w2_ref[0],
                      preferred_element_type=jnp.float32) + b2_ref[0]
        x_ref[...] = _layernorm(h1 + ffn, ln2g_ref[0],
                                ln2b_ref[0]).astype(jnp.bfloat16)

    return kernel


def encoder_stack(x0, mask_bias, stack):
    BS, Dm = x0.shape
    B, _, S = mask_bias.shape
    L = stack["wqkv"].shape[0]
    NB = 2 if B % 2 == 0 else 1      # batch blocks (v7x: one per TensorCore)
    BB = B // NB
    kernel = make_encoder_stack_kernel(BB, S)

    wmap = lambda nb, l: (l, 0, 0)   # streamed per-layer weight blocks
    xmap = lambda nb, l: (nb, 0)     # per-batch-block activation rows
    bmap = lambda nb, l: (nb, 0, 0)  # per-batch-block mask bias

    in_specs = [
        pl.BlockSpec((BB * S, Dm), xmap),          # x0: post-emb-LN slab (bf16)
        pl.BlockSpec((BB, 1, S), bmap),            # additive attention bias
        pl.BlockSpec((1, Dm, 3 * Dm), wmap),       # wqkv (bf16, Q pre-scaled)
        pl.BlockSpec((1, 1, 3 * Dm), wmap),        # bqkv
        pl.BlockSpec((1, Dm, Dm), wmap),           # wo
        pl.BlockSpec((1, 1, Dm), wmap),            # bo
        pl.BlockSpec((1, 1, Dm), wmap),            # ln1 gamma
        pl.BlockSpec((1, 1, Dm), wmap),            # ln1 beta
        pl.BlockSpec((1, Dm, FFN), wmap),          # w1
        pl.BlockSpec((1, 1, FFN), wmap),           # b1
        pl.BlockSpec((1, FFN, Dm), wmap),          # w2
        pl.BlockSpec((1, 1, Dm), wmap),            # b2
        pl.BlockSpec((1, 1, Dm), wmap),            # ln2 gamma
        pl.BlockSpec((1, 1, Dm), wmap),            # ln2 beta
    ]
    return pl.pallas_call(
        kernel,
        out_shape=jax.ShapeDtypeStruct((BS, Dm), jnp.bfloat16),
        grid=(NB, L),
        in_specs=in_specs,
        out_specs=pl.BlockSpec((BB * S, Dm), xmap),   # VMEM-resident slab
        input_output_aliases={0: 0},   # x0's HBM buffer doubles as the output
        compiler_params=pltpu.CompilerParams(
            dimension_semantics=("parallel", "arbitrary"),
            vmem_limit_bytes=48 * 1024 * 1024),
    )(x0, mask_bias,
      stack["wqkv"], stack["bqkv"], stack["wo"], stack["bo"],
      stack["ln1g"], stack["ln1b"], stack["w1"], stack["b1"],
      stack["w2"], stack["b2"], stack["ln2g"], stack["ln2b"])


# ------------------------------- parameters ----------------------------------
def init_params(key):
    keys = jax.random.split(key, 4 + LAYERS)
    std = 0.02
    scale = 1.0 / math.sqrt(DH)
    params = {
        "word_emb": jax.random.normal(keys[0], (VOCAB, D), jnp.float32) * std,
        "pos_emb": jax.random.normal(keys[1], (MAX_POS, D), jnp.float32) * std,
        "type_emb": jax.random.normal(keys[2], (TYPE_VOCAB, D), jnp.float32) * std,
        "emb_ln_g": jnp.ones((1, D), jnp.float32),
        "emb_ln_b": jnp.zeros((1, D), jnp.float32),
    }
    wqkv, wo, w1, w2 = [], [], [], []
    for li in range(LAYERS):
        lk = jax.random.split(keys[4 + li], 6)
        wq = jax.random.normal(lk[0], (D, D), jnp.float32) * std
        wq = wq * scale                                     # fold softmax scale
        wk = jax.random.normal(lk[1], (D, D), jnp.float32) * std
        wv = jax.random.normal(lk[2], (D, D), jnp.float32) * std
        wqkv.append(jnp.concatenate([wq, wk, wv], axis=1))  # fused QKV
        wo.append(jax.random.normal(lk[3], (D, D), jnp.float32) * std)
        w1.append(jax.random.normal(lk[4], (D, FFN), jnp.float32) * std)
        w2.append(jax.random.normal(lk[5], (FFN, D), jnp.float32) * std)
    # Matmul weights in bf16 (f32 accumulation in-kernel); LN/bias params f32.
    params["stack"] = {
        "wqkv": jnp.stack(wqkv).astype(jnp.bfloat16),        # (L, D, 3D)
        "bqkv": jnp.zeros((LAYERS, 1, 3 * D), jnp.float32),
        "wo": jnp.stack(wo).astype(jnp.bfloat16),            # (L, D, D)
        "bo": jnp.zeros((LAYERS, 1, D), jnp.float32),
        "ln1g": jnp.ones((LAYERS, 1, D), jnp.float32),
        "ln1b": jnp.zeros((LAYERS, 1, D), jnp.float32),
        "w1": jnp.stack(w1).astype(jnp.bfloat16),            # (L, D, FFN)
        "b1": jnp.zeros((LAYERS, 1, FFN), jnp.float32),
        "w2": jnp.stack(w2).astype(jnp.bfloat16),            # (L, FFN, D)
        "b2": jnp.zeros((LAYERS, 1, D), jnp.float32),
        "ln2g": jnp.ones((LAYERS, 1, D), jnp.float32),
        "ln2b": jnp.zeros((LAYERS, 1, D), jnp.float32),
    }
    return params


# ------------------------------- forward --------------------------------------
@jax.jit
def roberta_forward(params, input_ids, attention_mask, token_type_ids):
    # TODO(synk): RobertaTokenizer string tokenization / pretrained checkpoint
    # load have no Pallas equivalent; forward starts from integer token ids
    # with synthetic weights.
    B, S = input_ids.shape

    # RoBERTa position ids: cumulative count of non-pad tokens, offset by pad.
    not_pad = (input_ids != PAD_IDX).astype(jnp.int32)
    position_ids = jnp.cumsum(not_pad, axis=1) * not_pad + PAD_IDX

    # Embedding table gathers (glue, plain JAX).
    emb = (params["word_emb"][input_ids]
           + params["pos_emb"][position_ids]
           + params["type_emb"][token_type_ids]).astype(jnp.float32)

    # Embedding LayerNorm in the wrapper (f32); only the bf16 post-LN slab is
    # handed to the kernel and aliased into its output buffer.
    x0 = _layernorm(emb, params["emb_ln_g"], params["emb_ln_b"])
    x0 = x0.reshape(B * S, D).astype(jnp.bfloat16)

    # Additive attention mask bias: 0 for real tokens, -1e9 for padding.
    mask_bias = ((1.0 - attention_mask.astype(jnp.float32)) * -1e9).reshape(B, 1, S)

    # Whole encoder stack in one Pallas kernel; activations stay VMEM-resident.
    x = encoder_stack(x0, mask_bias, params["stack"])

    # hidden_state[:, 0]  (CLS token), returned in f32 like the reference.
    return x.reshape(B, S, D)[:, 0].astype(jnp.float32)


# --------------------------------- main ---------------------------------------
if __name__ == "__main__":
    B, S = 2, 8
    assert S + PAD_IDX < MAX_POS, "position table too small for this S"

    key = jax.random.PRNGKey(0)
    k_param, k_ids = jax.random.split(key)

    params = init_params(k_param)

    # Synthetic "tokenized" batch: second sequence has 2 padding tokens.
    input_ids = jax.random.randint(k_ids, (B, S), 2, VOCAB, dtype=jnp.int32)
    input_ids = input_ids.at[1, 6:].set(PAD_IDX)
    attention_mask = jnp.array([[1] * 8, [1] * 6 + [0] * 2], dtype=jnp.int32)
    token_type_ids = jnp.zeros((B, S), dtype=jnp.int32)

    out = roberta_forward(params, input_ids, attention_mask, token_type_ids)
    out = jax.block_until_ready(out)
    assert out.shape == (B, D), out.shape
    assert bool(jnp.all(jnp.isfinite(out)))
    print("KERNEL_OK")
</pallas_src>

<mosaic_0001>
module attributes {stable_mosaic.version = 11 : i64} {
  func.func @kernel(%arg0: i32, %arg1: i32, %arg2: memref<8x128xbf16, #tpu.memory_space<vmem>>, %arg3: memref<1x1x8xf32, #tpu.memory_space<vmem>>, %arg4: memref<1x128x384xbf16, #tpu.memory_space<vmem>>, %arg5: memref<1x1x384xf32, #tpu.memory_space<vmem>>, %arg6: memref<1x128x128xbf16, #tpu.memory_space<vmem>>, %arg7: memref<1x1x128xf32, #tpu.memory_space<vmem>>, %arg8: memref<1x1x128xf32, #tpu.memory_space<vmem>>, %arg9: memref<1x1x128xf32, #tpu.memory_space<vmem>>, %arg10: memref<1x128x256xbf16, #tpu.memory_space<vmem>>, %arg11: memref<1x1x256xf32, #tpu.memory_space<vmem>>, %arg12: memref<1x256x128xbf16, #tpu.memory_space<vmem>>, %arg13: memref<1x1x128xf32, #tpu.memory_space<vmem>>, %arg14: memref<1x1x128xf32, #tpu.memory_space<vmem>>, %arg15: memref<1x1x128xf32, #tpu.memory_space<vmem>>, %arg16: memref<8x128xbf16, #tpu.memory_space<vmem>>) attributes {dimension_semantics = [#tpu.dimension_semantics<parallel>, #tpu.dimension_semantics<arbitrary>], iteration_bounds = array<i64: 2, 2>, scalar_prefetch = 0 : i64, scratch_operands = 0 : i64, tpu.core_type = #tpu.core_type<tc>, window_params = [{transform_indices = @transform_0, window_bounds = array<i64: 8, 128>}, {transform_indices = @transform_1, window_bounds = array<i64: 1, 1, 8>}, {transform_indices = @transform_2, window_bounds = array<i64: 1, 128, 384>}, {transform_indices = @transform_3, window_bounds = array<i64: 1, 1, 384>}, {transform_indices = @transform_4, window_bounds = array<i64: 1, 128, 128>}, {transform_indices = @transform_5, window_bounds = array<i64: 1, 1, 128>}, {transform_indices = @transform_6, window_bounds = array<i64: 1, 1, 128>}, {transform_indices = @transform_7, window_bounds = array<i64: 1, 1, 128>}, {transform_indices = @transform_8, window_bounds = array<i64: 1, 128, 256>}, {transform_indices = @transform_9, window_bounds = array<i64: 1, 1, 256>}, {transform_indices = @transform_10, window_bounds = array<i64: 1, 256, 128>}, {transform_indices = @transform_11, window_bounds = array<i64: 1, 1, 128>}, {transform_indices = @transform_12, window_bounds = array<i64: 1, 1, 128>}, {transform_indices = @transform_13, window_bounds = array<i64: 1, 1, 128>}, {transform_indices = @transform_14, window_bounds = array<i64: 8, 128>}]} {
    %c0_i32 = arith.constant 0 : i32
    %0 = arith.cmpi eq, %arg1, %c0_i32 : i32
    %1 = arith.extui %0 : i1 to i32
    %c0_i32_0 = arith.constant 0 : i32
    %2 = arith.cmpi ne, %1, %c0_i32_0 : i32
    scf.if %2 {
      %c0_73 = arith.constant 0 : index
      %c0_74 = arith.constant 0 : index
      %173 = vector.load %arg2[%c0_73, %c0_74] : memref<8x128xbf16, #tpu.memory_space<vmem>>, vector<8x128xbf16>
      %c0_75 = arith.constant 0 : index
      %c0_76 = arith.constant 0 : index
      %174 = vector.load %arg16[%c0_75, %c0_76] : memref<8x128xbf16, #tpu.memory_space<vmem>>, vector<8x128xbf16>
      tpu.vector_store %arg16[%c0_75, %c0_76], %173 {strides = array<i32>} : memref<8x128xbf16, #tpu.memory_space<vmem>>, vector<8x128xbf16>,
    } else {
    }
    %c0 = arith.constant 0 : index
    %c0_1 = arith.constant 0 : index
    %3 = vector.load %arg16[%c0, %c0_1] : memref<8x128xbf16, #tpu.memory_space<vmem>>, vector<8x128xbf16>
    %c0_2 = arith.constant 0 : index
    %c0_3 = arith.constant 0 : index
    %c0_4 = arith.constant 0 : index
    %4 = vector.load %arg4[%c0_2, %c0_3, %c0_4] : memref<1x128x384xbf16, #tpu.memory_space<vmem>>, vector<1x128x384xbf16>
    %5 = vector.shape_cast %4 : vector<1x128x384xbf16> to vector<128x384xbf16>
    %cst = arith.constant dense<0.000000e+00> : vector<8x384xf32>
    %6 = tpu.matmul %3, %5, %cst {dimension_numbers = #tpu.dot_dimension_numbers<[1], [0], [0], [1], [0, 0, 1, 1], [], []>} : vector<8x128xbf16>, vector<128x384xbf16>, vector<8x384xf32> -> vector<8x384xf32>
    %c0_5 = arith.constant 0 : index
    %c0_6 = arith.constant 0 : index
    %c0_7 = arith.constant 0 : index
    %7 = vector.load %arg5[%c0_5, %c0_6, %c0_7] : memref<1x1x384xf32, #tpu.memory_space<vmem>>, vector<1x1x384xf32>
    %8 = vector.shape_cast %7 : vector<1x1x384xf32> to vector<1x384xf32>
    %9 = vector.broadcast %8 : vector<1x384xf32> to vector<8x384xf32>
    %10 = arith.addf %6, %9 : vector<8x384xf32>
    %11 = arith.truncf %10 : vector<8x384xf32> to vector<8x384xbf16>
    %12 = vector.extract_strided_slice %11 {offsets = [0, 0], sizes = [8, 128], strides = [1, 1]} : vector<8x384xbf16> to vector<8x128xbf16>
    %13 = vector.extract_strided_slice %11 {offsets = [0, 128], sizes = [8, 128], strides = [1, 1]} : vector<8x384xbf16> to vector<8x128xbf16>
    %14 = vector.extract_strided_slice %11 {offsets = [0, 256], sizes = [8, 128], strides = [1, 1]} : vector<8x384xbf16> to vector<8x128xbf16>
    %15 = vector.extract_strided_slice %12 {offsets = [0, 0], sizes = [8, 32], strides = [1, 1]} : vector<8x128xbf16> to vector<8x32xbf16>
    %16 = vector.extract_strided_slice %12 {offsets = [0, 32], sizes = [8, 32], strides = [1, 1]} : vector<8x128xbf16> to vector<8x32xbf16>
    %17 = vector.extract_strided_slice %12 {offsets = [0, 64], sizes = [8, 32], strides = [1, 1]} : vector<8x128xbf16> to vector<8x32xbf16>
    %18 = vector.extract_strided_slice %12 {offsets = [0, 96], sizes = [8, 32], strides = [1, 1]} : vector<8x128xbf16> to vector<8x32xbf16>
    %19 = vector.shape_cast %15 : vector<8x32xbf16> to vector<1x8x32xbf16>
    %20 = vector.shape_cast %16 : vector<8x32xbf16> to vector<1x8x32xbf16>
    %21 = vector.shape_cast %17 : vector<8x32xbf16> to vector<1x8x32xbf16>
    %22 = vector.shape_cast %18 : vector<8x32xbf16> to vector<1x8x32xbf16>
    %23 = tpu.concatenate %19, %20, %21, %22 in 0 : vector<1x8x32xbf16>, vector<1x8x32xbf16>, vector<1x8x32xbf16>, vector<1x8x32xbf16> -> vector<4x8x32xbf16>
    %24 = vector.extract_strided_slice %13 {offsets = [0, 0], sizes = [8, 32], strides = [1, 1]} : vector<8x128xbf16> to vector<8x32xbf16>
    %25 = vector.extract_strided_slice %13 {offsets = [0, 32], sizes = [8, 32], strides = [1, 1]} : vector<8x128xbf16> to vector<8x32xbf16>
    %26 = vector.extract_strided_slice %13 {offsets = [0, 64], sizes = [8, 32], strides = [1, 1]} : vector<8x128xbf16> to vector<8x32xbf16>
    %27 = vector.extract_strided_slice %13 {offsets = [0, 96], sizes = [8, 32], strides = [1, 1]} : vector<8x128xbf16> to vector<8x32xbf16>
    %28 = vector.shape_cast %24 : vector<8x32xbf16> to vector<1x8x32xbf16>
    %29 = vector.shape_cast %25 : vector<8x32xbf16> to vector<1x8x32xbf16>
    %30 = vector.shape_cast %26 : vector<8x32xbf16> to vector<1x8x32xbf16>
    %31 = vector.shape_cast %27 : vector<8x32xbf16> to vector<1x8x32xbf16>
    %32 = tpu.concatenate %28, %29, %30, %31 in 0 : vector<1x8x32xbf16>, vector<1x8x32xbf16>, vector<1x8x32xbf16>, vector<1x8x32xbf16> -> vector<4x8x32xbf16>
    %33 = vector.extract_strided_slice %14 {offsets = [0, 0], sizes = [8, 32], strides = [1, 1]} : vector<8x128xbf16> to vector<8x32xbf16>
    %34 = vector.extract_strided_slice %14 {offsets = [0, 32], sizes = [8, 32], strides = [1, 1]} : vector<8x128xbf16> to vector<8x32xbf16>
    %35 = vector.extract_strided_slice %14 {offsets = [0, 64], sizes = [8, 32], strides = [1, 1]} : vector<8x128xbf16> to vector<8x32xbf16>
    %36 = vector.extract_strided_slice %14 {offsets = [0, 96], sizes = [8, 32], strides = [1, 1]} : vector<8x128xbf16> to vector<8x32xbf16>
    %37 = vector.shape_cast %33 : vector<8x32xbf16> to vector<1x8x32xbf16>
    %38 = vector.shape_cast %34 : vector<8x32xbf16> to vector<1x8x32xbf16>
    %39 = vector.shape_cast %35 : vector<8x32xbf16> to vector<1x8x32xbf16>
    %40 = vector.shape_cast %36 : vector<8x32xbf16> to vector<1x8x32xbf16>
    %41 = tpu.concatenate %37, %38, %39, %40 in 0 : vector<1x8x32xbf16>, vector<1x8x32xbf16>, vector<1x8x32xbf16>, vector<1x8x32xbf16> -> vector<4x8x32xbf16>
    %c0_8 = arith.constant 0 : index
    %c0_9 = arith.constant 0 : index
    %c0_10 = arith.constant 0 : index
    %42 = vector.load %arg3[%c0_8, %c0_9, %c0_10] : memref<1x1x8xf32, #tpu.memory_space<vmem>>, vector<1x1x8xf32>
    %43 = vector.shape_cast %42 : vector<1x1x8xf32> to vector<1x8xf32>
    %c0_11 = arith.constant 0 : index
    %c0_12 = arith.constant 0 : index
    %c0_13 = arith.constant 0 : index
    %44 = vector.load %arg3[%c0_11, %c0_12, %c0_13] : memref<1x1x8xf32, #tpu.memory_space<vmem>>, vector<1x1x8xf32>
    %45 = vector.shape_cast %44 : vector<1x1x8xf32> to vector<1x8xf32>
    %c0_14 = arith.constant 0 : index
    %c0_15 = arith.constant 0 : index
    %c0_16 = arith.constant 0 : index
    %46 = vector.load %arg3[%c0_14, %c0_15, %c0_16] : memref<1x1x8xf32, #tpu.memory_space<vmem>>, vector<1x1x8xf32>
    %47 = vector.shape_cast %46 : vector<1x1x8xf32> to vector<1x8xf32>
    %c0_17 = arith.constant 0 : index
    %c0_18 = arith.constant 0 : index
    %c0_19 = arith.constant 0 : index
    %48 = vector.load %arg3[%c0_17, %c0_18, %c0_19] : memref<1x1x8xf32, #tpu.memory_space<vmem>>, vector<1x1x8xf32>
    %49 = vector.shape_cast %48 : vector<1x1x8xf32> to vector<1x8xf32>
    %50 = vector.shape_cast %43 : vector<1x8xf32> to vector<1x1x8xf32>
    %51 = vector.shape_cast %45 : vector<1x8xf32> to vector<1x1x8xf32>
    %52 = vector.shape_cast %47 : vector<1x8xf32> to vector<1x1x8xf32>
    %53 = vector.shape_cast %49 : vector<1x8xf32> to vector<1x1x8xf32>
    %54 = tpu.concatenate %50, %51, %52, %53 in 0 : vector<1x1x8xf32>, vector<1x1x8xf32>, vector<1x1x8xf32>, vector<1x1x8xf32> -> vector<4x1x8xf32>
    "tpu.trace_start"() <{level = 10 : i32, message = "bqd,bkd->bqk"}> : () -> ()
    %cst_20 = arith.constant dense<0.000000e+00> : vector<4x8x8xf32>
    %55 = tpu.matmul %23, %32, %cst_20 {dimension_numbers = #tpu.dot_dimension_numbers<[2], [2], [1], [1], [0, 0, 0, 1, 1, 1], [0], [0]>} : vector<4x8x32xbf16>, vector<4x8x32xbf16>, vector<4x8x8xf32> -> vector<4x8x8xf32>
    "tpu.trace_stop"() : () -> ()
    %56 = vector.broadcast %54 : vector<4x1x8xf32> to vector<4x8x8xf32>
    %57 = arith.addf %55, %56 : vector<4x8x8xf32>
    %cst_21 = arith.constant dense<0xFF800000> : vector<4x8xf32>
    %58 = vector.multi_reduction <maximumf>, %57, %cst_21 [2] : vector<4x8x8xf32> to vector<4x8xf32>
    %59 = vector.shape_cast %58 : vector<4x8xf32> to vector<4x8x1xf32>
    %60 = vector.broadcast %59 : vector<4x8x1xf32> to vector<4x8x8xf32>
    %61 = arith.subf %57, %60 : vector<4x8x8xf32>
    %62 = math.exp %61 : vector<4x8x8xf32>
    %cst_22 = arith.constant dense<0.000000e+00> : vector<4x8xf32>
    %63 = vector.multi_reduction <add>, %62, %cst_22 [2] : vector<4x8x8xf32> to vector<4x8xf32>
    %64 = vector.shape_cast %63 : vector<4x8xf32> to vector<4x8x1xf32>
    %65 = tpu.reciprocal %64 {approx = true} : vector<4x8x1xf32> -> vector<4x8x1xf32>
    %66 = vector.broadcast %65 : vector<4x8x1xf32> to vector<4x8x8xf32>
    %67 = arith.mulf %62, %66 : vector<4x8x8xf32>
    %68 = arith.truncf %67 : vector<4x8x8xf32> to vector<4x8x8xbf16>
    "tpu.trace_start"() <{level = 10 : i32, message = "bqk,bkd->bqd"}> : () -> ()
    %cst_23 = arith.constant dense<0.000000e+00> : vector<4x8x32xf32>
    %69 = tpu.matmul %68, %41, %cst_23 {dimension_numbers = #tpu.dot_dimension_numbers<[2], [1], [1], [2], [0, 0, 0, 1, 1, 2], [0], [0]>} : vector<4x8x8xbf16>, vector<4x8x32xbf16>, vector<4x8x32xf32> -> vector<4x8x32xf32>
    "tpu.trace_stop"() : () -> ()
    %70 = arith.truncf %69 : vector<4x8x32xf32> to vector<4x8x32xbf16>
    %71 = vector.extract_strided_slice %70 {offsets = [0, 0, 0], sizes = [1, 8, 32], strides = [1, 1, 1]} : vector<4x8x32xbf16> to vector<1x8x32xbf16>
    %72 = vector.shape_cast %71 : vector<1x8x32xbf16> to vector<8x32xbf16>
    %73 = vector.extract_strided_slice %70 {offsets = [1, 0, 0], sizes = [1, 8, 32], strides = [1, 1, 1]} : vector<4x8x32xbf16> to vector<1x8x32xbf16>
    %74 = vector.shape_cast %73 : vector<1x8x32xbf16> to vector<8x32xbf16>
    %75 = vector.extract_strided_slice %70 {offsets = [2, 0, 0], sizes = [1, 8, 32], strides = [1, 1, 1]} : vector<4x8x32xbf16> to vector<1x8x32xbf16>
    %76 = vector.shape_cast %75 : vector<1x8x32xbf16> to vector<8x32xbf16>
    %77 = vector.extract_strided_slice %70 {offsets = [3, 0, 0], sizes = [1, 8, 32], strides = [1, 1, 1]} : vector<4x8x32xbf16> to vector<1x8x32xbf16>
    %78 = vector.shape_cast %77 : vector<1x8x32xbf16> to vector<8x32xbf16>
    %79 = tpu.concatenate %72, %74, %76, %78 in 1 : vector<8x32xbf16>, vector<8x32xbf16>, vector<8x32xbf16>, vector<8x32xbf16> -> vector<8x128xbf16>
    %c0_24 = arith.constant 0 : index
    %c0_25 = arith.constant 0 : index
    %c0_26 = arith.constant 0 : index
    %80 = vector.load %arg6[%c0_24, %c0_25, %c0_26] : memref<1x128x128xbf16, #tpu.memory_space<vmem>>, vector<1x128x128xbf16>
    %81 = vector.shape_cast %80 : vector<1x128x128xbf16> to vector<128x128xbf16>
    %cst_27 = arith.constant dense<0.000000e+00> : vector<8x128xf32>
    %82 = tpu.matmul %79, %81, %cst_27 {dimension_numbers = #tpu.dot_dimension_numbers<[1], [0], [0], [1], [0, 0, 1, 1], [], []>} : vector<8x128xbf16>, vector<128x128xbf16>, vector<8x128xf32> -> vector<8x128xf32>
    %c0_28 = arith.constant 0 : index
    %c0_29 = arith.constant 0 : index
    %c0_30 = arith.constant 0 : index
    %83 = vector.load %arg7[%c0_28, %c0_29, %c0_30] : memref<1x1x128xf32, #tpu.memory_space<vmem>>, vector<1x1x128xf32>
    %84 = vector.shape_cast %83 : vector<1x1x128xf32> to vector<1x128xf32>
    %85 = vector.broadcast %84 : vector<1x128xf32> to vector<8x128xf32>
    %86 = arith.addf %82, %85 : vector<8x128xf32>
    %87 = arith.extf %3 : vector<8x128xbf16> to vector<8x128xf32>
    %88 = arith.addf %87, %86 : vector<8x128xf32>
    %c0_31 = arith.constant 0 : index
    %c0_32 = arith.constant 0 : index
    %c0_33 = arith.constant 0 : index
    %89 = vector.load %arg8[%c0_31, %c0_32, %c0_33] : memref<1x1x128xf32, #tpu.memory_space<vmem>>, vector<1x1x128xf32>
    %90 = vector.shape_cast %89 : vector<1x1x128xf32> to vector<1x128xf32>
    %c0_34 = arith.constant 0 : index
    %c0_35 = arith.constant 0 : index
    %c0_36 = arith.constant 0 : index
    %91 = vector.load %arg9[%c0_34, %c0_35, %c0_36] : memref<1x1x128xf32, #tpu.memory_space<vmem>>, vector<1x1x128xf32>
    %92 = vector.shape_cast %91 : vector<1x1x128xf32> to vector<1x128xf32>
    %cst_37 = arith.constant dense<0.000000e+00> : vector<8xf32>
    %93 = vector.multi_reduction <add>, %88, %cst_37 [1] : vector<8x128xf32> to vector<8xf32>
    %94 = vector.shape_cast %93 : vector<8xf32> to vector<8x1xf32>
    %cst_38 = arith.constant 1.280000e+02 : f32
    %95 = vector.broadcast %cst_38 : f32 to vector<8x1xf32>
    %96 = arith.divf %94, %95 : vector<8x1xf32>
    %97 = vector.broadcast %96 : vector<8x1xf32> to vector<8x128xf32>
    %98 = arith.subf %88, %97 : vector<8x128xf32>
    %99 = arith.mulf %98, %98 : vector<8x128xf32>
    %cst_39 = arith.constant dense<0.000000e+00> : vector<8xf32>
    %100 = vector.multi_reduction <add>, %99, %cst_39 [1] : vector<8x128xf32> to vector<8xf32>
    %101 = vector.shape_cast %100 : vector<8xf32> to vector<8x1xf32>
    %cst_40 = arith.constant 1.280000e+02 : f32
    %102 = vector.broadcast %cst_40 : f32 to vector<8x1xf32>
    %103 = arith.divf %101, %102 : vector<8x1xf32>
    %104 = vector.broadcast %96 : vector<8x1xf32> to vector<8x128xf32>
    %105 = arith.subf %88, %104 : vector<8x128xf32>
    %cst_41 = arith.constant 9.99999974E-6 : f32
    %106 = vector.broadcast %cst_41 : f32 to vector<8x1xf32>
    %107 = arith.addf %103, %106 : vector<8x1xf32>
    %108 = math.rsqrt %107 : vector<8x1xf32>
    %109 = vector.broadcast %108 : vector<8x1xf32> to vector<8x128xf32>
    %110 = arith.mulf %105, %109 : vector<8x128xf32>
    %111 = vector.broadcast %90 : vector<1x128xf32> to vector<8x128xf32>
    %112 = arith.mulf %110, %111 : vector<8x128xf32>
    %113 = vector.broadcast %92 : vector<1x128xf32> to vector<8x128xf32>
    %114 = arith.addf %112, %113 : vector<8x128xf32>
    %115 = arith.truncf %114 : vector<8x128xf32> to vector<8x128xbf16>
    %c0_42 = arith.constant 0 : index
    %c0_43 = arith.constant 0 : index
    %c0_44 = arith.constant 0 : index
    %116 = vector.load %arg10[%c0_42, %c0_43, %c0_44] : memref<1x128x256xbf16, #tpu.memory_space<vmem>>, vector<1x128x256xbf16>
    %117 = vector.shape_cast %116 : vector<1x128x256xbf16> to vector<128x256xbf16>
    %cst_45 = arith.constant dense<0.000000e+00> : vector<8x256xf32>
    %118 = tpu.matmul %115, %117, %cst_45 {dimension_numbers = #tpu.dot_dimension_numbers<[1], [0], [0], [1], [0, 0, 1, 1], [], []>} : vector<8x128xbf16>, vector<128x256xbf16>, vector<8x256xf32> -> vector<8x256xf32>
    %c0_46 = arith.constant 0 : index
    %c0_47 = arith.constant 0 : index
    %c0_48 = arith.constant 0 : index
    %119 = vector.load %arg11[%c0_46, %c0_47, %c0_48] : memref<1x1x256xf32, #tpu.memory_space<vmem>>, vector<1x1x256xf32>
    %120 = vector.shape_cast %119 : vector<1x1x256xf32> to vector<1x256xf32>
    %121 = vector.broadcast %120 : vector<1x256xf32> to vector<8x256xf32>
    %122 = arith.addf %118, %121 : vector<8x256xf32>
    %123 = arith.mulf %122, %122 : vector<8x256xf32>
    %124 = arith.mulf %122, %123 : vector<8x256xf32>
    %cst_49 = arith.constant 4.471500e-02 : f32
    %125 = vector.broadcast %cst_49 : f32 to vector<8x256xf32>
    %126 = arith.mulf %125, %124 : vector<8x256xf32>
    %127 = arith.addf %122, %126 : vector<8x256xf32>
    %cst_50 = arith.constant 0.797884583 : f32
    %128 = vector.broadcast %cst_50 : f32 to vector<8x256xf32>
    %129 = arith.mulf %128, %127 : vector<8x256xf32>
    %130 = math.tanh %129 : vector<8x256xf32>
    %cst_51 = arith.constant 1.000000e+00 : f32
    %131 = vector.broadcast %cst_51 : f32 to vector<8x256xf32>
    %132 = arith.addf %131, %130 : vector<8x256xf32>
    %cst_52 = arith.constant 5.000000e-01 : f32
    %133 = vector.broadcast %cst_52 : f32 to vector<8x256xf32>
    %134 = arith.mulf %133, %132 : vector<8x256xf32>
    %135 = arith.mulf %122, %134 : vector<8x256xf32>
    %136 = arith.truncf %135 : vector<8x256xf32> to vector<8x256xbf16>
    %c0_53 = arith.constant 0 : index
    %c0_54 = arith.constant 0 : index
    %c0_55 = arith.constant 0 : index
    %137 = vector.load %arg12[%c0_53, %c0_54, %c0_55] : memref<1x256x128xbf16, #tpu.memory_space<vmem>>, vector<1x256x128xbf16>
    %138 = vector.shape_cast %137 : vector<1x256x128xbf16> to vector<256x128xbf16>
    %cst_56 = arith.constant dense<0.000000e+00> : vector<8x128xf32>
    %139 = tpu.matmul %136, %138, %cst_56 {dimension_numbers = #tpu.dot_dimension_numbers<[1], [0], [0], [1], [0, 0, 1, 1], [], []>} : vector<8x256xbf16>, vector<256x128xbf16>, vector<8x128xf32> -> vector<8x128xf32>
    %c0_57 = arith.constant 0 : index
    %c0_58 = arith.constant 0 : index
    %c0_59 = arith.constant 0 : index
    %140 = vector.load %arg13[%c0_57, %c0_58, %c0_59] : memref<1x1x128xf32, #tpu.memory_space<vmem>>, vector<1x1x128xf32>
    %141 = vector.shape_cast %140 : vector<1x1x128xf32> to vector<1x128xf32>
    %142 = vector.broadcast %141 : vector<1x128xf32> to vector<8x128xf32>
    %143 = arith.addf %139, %142 : vector<8x128xf32>
    %144 = arith.addf %114, %143 : vector<8x128xf32>
    %c0_60 = arith.constant 0 : index
    %c0_61 = arith.constant 0 : index
    %c0_62 = arith.constant 0 : index
    %145 = vector.load %arg14[%c0_60, %c0_61, %c0_62] : memref<1x1x128xf32, #tpu.memory_space<vmem>>, vector<1x1x128xf32>
    %146 = vector.shape_cast %145 : vector<1x1x128xf32> to vector<1x128xf32>
    %c0_63 = arith.constant 0 : index
    %c0_64 = arith.constant 0 : index
    %c0_65 = arith.constant 0 : index
    %147 = vector.load %arg15[%c0_63, %c0_64, %c0_65] : memref<1x1x128xf32, #tpu.memory_space<vmem>>, vector<1x1x128xf32>
    %148 = vector.shape_cast %147 : vector<1x1x128xf32> to vector<1x128xf32>
    %cst_66 = arith.constant dense<0.000000e+00> : vector<8xf32>
    %149 = vector.multi_reduction <add>, %144, %cst_66 [1] : vector<8x128xf32> to vector<8xf32>
    %150 = vector.shape_cast %149 : vector<8xf32> to vector<8x1xf32>
    %cst_67 = arith.constant 1.280000e+02 : f32
    %151 = vector.broadcast %cst_67 : f32 to vector<8x1xf32>
    %152 = arith.divf %150, %151 : vector<8x1xf32>
    %153 = vector.broadcast %152 : vector<8x1xf32> to vector<8x128xf32>
    %154 = arith.subf %144, %153 : vector<8x128xf32>
    %155 = arith.mulf %154, %154 : vector<8x128xf32>
    %cst_68 = arith.constant dense<0.000000e+00> : vector<8xf32>
    %156 = vector.multi_reduction <add>, %155, %cst_68 [1] : vector<8x128xf32> to vector<8xf32>
    %157 = vector.shape_cast %156 : vector<8xf32> to vector<8x1xf32>
    %cst_69 = arith.constant 1.280000e+02 : f32
    %158 = vector.broadcast %cst_69 : f32 to vector<8x1xf32>
    %159 = arith.divf %157, %158 : vector<8x1xf32>
    %160 = vector.broadcast %152 : vector<8x1xf32> to vector<8x128xf32>
    %161 = arith.subf %144, %160 : vector<8x128xf32>
    %cst_70 = arith.constant 9.99999974E-6 : f32
    %162 = vector.broadcast %cst_70 : f32 to vector<8x1xf32>
    %163 = arith.addf %159, %162 : vector<8x1xf32>
    %164 = math.rsqrt %163 : vector<8x1xf32>
    %165 = vector.broadcast %164 : vector<8x1xf32> to vector<8x128xf32>
    %166 = arith.mulf %161, %165 : vector<8x128xf32>
    %167 = vector.broadcast %146 : vector<1x128xf32> to vector<8x128xf32>
    %168 = arith.mulf %166, %167 : vector<8x128xf32>
    %169 = vector.broadcast %148 : vector<1x128xf32> to vector<8x128xf32>
    %170 = arith.addf %168, %169 : vector<8x128xf32>
    %171 = arith.truncf %170 : vector<8x128xf32> to vector<8x128xbf16>
    %c0_71 = arith.constant 0 : index
    %c0_72 = arith.constant 0 : index
    %172 = vector.load %arg16[%c0_71, %c0_72] : memref<8x128xbf16, #tpu.memory_space<vmem>>, vector<8x128xbf16>
    tpu.vector_store %arg16[%c0_71, %c0_72], %171 {strides = array<i32>} : memref<8x128xbf16, #tpu.memory_space<vmem>>, vector<8x128xbf16>,
    return
  }
  func.func @transform_0(%arg0: i32, %arg1: i32) -> (i32, i32) {
    %c0_i32 = arith.constant 0 : i32
    %c0_i32_0 = arith.constant 0 : i32
    return %arg0, %c0_i32 : i32, i32
  }
  func.func @transform_1(%arg0: i32, %arg1: i32) -> (i32, i32, i32) {
    %c0_i32 = arith.constant 0 : i32
    %c0_i32_0 = arith.constant 0 : i32
    %c0_i32_1 = arith.constant 0 : i32
    return %arg0, %c0_i32, %c0_i32_0 : i32, i32, i32
  }
  func.func @transform_2(%arg0: i32, %arg1: i32) -> (i32, i32, i32) {
    %c0_i32 = arith.constant 0 : i32
    %c0_i32_0 = arith.constant 0 : i32
    %c0_i32_1 = arith.constant 0 : i32
    return %arg1, %c0_i32, %c0_i32_0 : i32, i32, i32
  }
  func.func @transform_3(%arg0: i32, %arg1: i32) -> (i32, i32, i32) {
    %c0_i32 = arith.constant 0 : i32
    %c0_i32_0 = arith.constant 0 : i32
    %c0_i32_1 = arith.constant 0 : i32
    return %arg1, %c0_i32, %c0_i32_0 : i32, i32, i32
  }
  func.func @transform_4(%arg0: i32, %arg1: i32) -> (i32, i32, i32) {
    %c0_i32 = arith.constant 0 : i32
    %c0_i32_0 = arith.constant 0 : i32
    %c0_i32_1 = arith.constant 0 : i32
    return %arg1, %c0_i32, %c0_i32_0 : i32, i32, i32
  }
  func.func @transform_5(%arg0: i32, %arg1: i32) -> (i32, i32, i32) {
    %c0_i32 = arith.constant 0 : i32
    %c0_i32_0 = arith.constant 0 : i32
    %c0_i32_1 = arith.constant 0 : i32
    return %arg1, %c0_i32, %c0_i32_0 : i32, i32, i32
  }
  func.func @transform_6(%arg0: i32, %arg1: i32) -> (i32, i32, i32) {
    %c0_i32 = arith.constant 0 : i32
    %c0_i32_0 = arith.constant 0 : i32
    %c0_i32_1 = arith.constant 0 : i32
    return %arg1, %c0_i32, %c0_i32_0 : i32, i32, i32
  }
  func.func @transform_7(%arg0: i32, %arg1: i32) -> (i32, i32, i32) {
    %c0_i32 = arith.constant 0 : i32
    %c0_i32_0 = arith.constant 0 : i32
    %c0_i32_1 = arith.constant 0 : i32
    return %arg1, %c0_i32, %c0_i32_0 : i32, i32, i32
  }
  func.func @transform_8(%arg0: i32, %arg1: i32) -> (i32, i32, i32) {
    %c0_i32 = arith.constant 0 : i32
    %c0_i32_0 = arith.constant 0 : i32
    %c0_i32_1 = arith.constant 0 : i32
    return %arg1, %c0_i32, %c0_i32_0 : i32, i32, i32
  }
  func.func @transform_9(%arg0: i32, %arg1: i32) -> (i32, i32, i32) {
    %c0_i32 = arith.constant 0 : i32
    %c0_i32_0 = arith.constant 0 : i32
    %c0_i32_1 = arith.constant 0 : i32
    return %arg1, %c0_i32, %c0_i32_0 : i32, i32, i32
  }
  func.func @transform_10(%arg0: i32, %arg1: i32) -> (i32, i32, i32) {
    %c0_i32 = arith.constant 0 : i32
    %c0_i32_0 = arith.constant 0 : i32
    %c0_i32_1 = arith.constant 0 : i32
    return %arg1, %c0_i32, %c0_i32_0 : i32, i32, i32
  }
  func.func @transform_11(%arg0: i32, %arg1: i32) -> (i32, i32, i32) {
    %c0_i32 = arith.constant 0 : i32
    %c0_i32_0 = arith.constant 0 : i32
    %c0_i32_1 = arith.constant 0 : i32
    return %arg1, %c0_i32, %c0_i32_0 : i32, i32, i32
  }
  func.func @transform_12(%arg0: i32, %arg1: i32) -> (i32, i32, i32) {
    %c0_i32 = arith.constant 0 : i32
    %c0_i32_0 = arith.constant 0 : i32
    %c0_i32_1 = arith.constant 0 : i32
    return %arg1, %c0_i32, %c0_i32_0 : i32, i32, i32
  }
  func.func @transform_13(%arg0: i32, %arg1: i32) -> (i32, i32, i32) {
    %c0_i32 = arith.constant 0 : i32
    %c0_i32_0 = arith.constant 0 : i32
    %c0_i32_1 = arith.constant 0 : i32
    return %arg1, %c0_i32, %c0_i32_0 : i32, i32, i32
  }
  func.func @transform_14(%arg0: i32, %arg1: i32) -> (i32, i32) {
    %c0_i32 = arith.constant 0 : i32
    %c0_i32_0 = arith.constant 0 : i32
    return %arg0, %c0_i32 : i32, i32
  }
}

</mosaic_0001>

<llo_original>
// kernel: roberta_forward.1
$region0: #{roberta_forward.1}
  #allocation0 [shape = 'u32[]', space=smem, size = 0x4, offset = 0x4, fixed_abs, tag = 'smem constant byte address 0x4 - core index']
  #allocation1 [shape = 'u32[72,128]{1,0:T(1,128)}', space=vmem, size = 0x9000, scoped, tag = 'internal scratch']
  %s0 = inlined_call_operand.vmem [shape: bf16[16,128], index: 0, kind: input, shape index: {}, may-alias: {0,14}]
  %s1 = inlined_call_operand.vmem [shape: f32[2,1,8], index: 1, kind: input, shape index: {}]
  %s2 = inlined_call_operand.hbm [shape: bf16[2,128,384], index: 2, kind: input, shape index: {}]
  %s3 = inlined_call_operand.vmem [shape: f32[2,1,384], index: 3, kind: input, shape index: {}]
  %s4 = inlined_call_operand.vmem [shape: bf16[2,128,128], index: 4, kind: input, shape index: {}]
  %s5 = inlined_call_operand.vmem [shape: f32[2,1,128], index: 5, kind: input, shape index: {}]
  %s6 = inlined_call_operand.vmem [shape: f32[2,1,128], index: 6, kind: input, shape index: {}]
  %s7 = inlined_call_operand.vmem [shape: f32[2,1,128], index: 7, kind: input, shape index: {}]
  %s8 = inlined_call_operand.vmem [shape: bf16[2,128,256], index: 8, kind: input, shape index: {}]
  %s9 = inlined_call_operand.vmem [shape: f32[2,1,256], index: 9, kind: input, shape index: {}]
  %s10 = inlined_call_operand.hbm [shape: bf16[2,256,128], index: 10, kind: input, shape index: {}]
  %s11 = inlined_call_operand.vmem [shape: f32[2,1,128], index: 11, kind: input, shape index: {}]
  %s12 = inlined_call_operand.vmem [shape: f32[2,1,128], index: 12, kind: input, shape index: {}]
  %s13 = inlined_call_operand.vmem [shape: f32[2,1,128], index: 13, kind: input, shape index: {}]
  %s14 = inlined_call_operand.vmem [shape: bf16[16,128], index: 14, kind: output, shape index: {}, may-alias: {0,14}]
  %s15 = sld [smem:[#allocation0]]
  $region101: #{roberta_forward.1} parent=0
    _
  %s17 = ssub.s32 1, %s15
  %s18 = scalar_select 0, %s17, %s15
  $region1: #{roberta_forward.1} parent=0
    #allocation2 [shape = 'u8[196608]{0}', space=vmem, size = 0x30000, scoped, tag = 'input window, operand 2']
    #allocation3 [shape = 's32[2]{0}', space=sflag, size = 0x8, scoped, tag = 'scoped memory for roberta_forward.1']
    #allocation4 [shape = 'u8[131072]{0}', space=vmem, size = 0x20000, scoped, tag = 'input window, operand 10']
    #allocation5 [shape = 's32[2]{0}', space=sflag, size = 0x8, scoped, tag = 'scoped memory for roberta_forward.1']
    %19 = vsyncpa [#allocation3], 0
    %s20 = scalar_lea.sflag [#allocation3], 1
    %21 = vsyncpa %s20, 0
    %22 = vsyncpa [#allocation5], 0
    %s23 = scalar_lea.sflag [#allocation5], 1
    %24 = vsyncpa %s23, 0
    loop: start=0, step=1, limit=6
    $region2: #{roberta_forward.1} parent=1 // loop_pre_header
      _
    $region3: #{roberta_forward.1} parent=1 // loop_header
      %s26 = sphi 0, %s30
      %p27 = scmp.ge.s32.totalorder %s26, 6
      %s33 = sphi 0, %s45
      %s34 = sphi 0, %s41
      %s35 = sphi 0, %s33
      %s36 = sphi 0, %s34
      %s37 = sphi 0, %s35
      %s38 = sphi 0, %s36
      %s48 = sphi 0, %s50
      %s51 = sphi 0, %s48
      %s52 = sphi 0, %s51
      %s68 = sphi 0, %s52
      %s74 = sphi 0, %s76
      %s77 = sphi 0, %s74
      %s78 = sphi 0, %s77
      %s94 = sphi 0, %s78
      %s100 = sphi 0, %s102
      %s103 = sphi 0, %s100
      %s104 = sphi 0, %s103
      %s120 = sphi 0, %s104
      %s126 = sphi 0, %s128
      %s129 = sphi 0, %s126
      %s130 = sphi 0, %s129
      %s146 = sphi 0, %s130
      %s152 = sphi 0, %s154
      %s155 = sphi 0, %s152
      %s156 = sphi 0, %s155
      %s172 = sphi 0, %s156
      %s178 = sphi 0, %s180
      %s181 = sphi 0, %s178
      %s182 = sphi 0, %s181
      %s198 = sphi 0, %s182
      %s204 = sphi 0, %s206
      %s207 = sphi 0, %s204
      %s208 = sphi 0, %s207
      %s224 = sphi 0, %s208
      %s230 = sphi 0, %s232
      %s233 = sphi 0, %s230
      %s234 = sphi 0, %s233
      %s250 = sphi 0, %s234
      %s256 = sphi 0, %s258
      %s259 = sphi 0, %s256
      %s260 = sphi 0, %s259
      %s276 = sphi 0, %s260
      %s282 = sphi 0, %s284
      %s285 = sphi 0, %s282
      %s286 = sphi 0, %s285
      %s302 = sphi 0, %s286
      %s308 = sphi 0, %s310
      %s311 = sphi 0, %s308
      %s312 = sphi 0, %s311
      %s328 = sphi 0, %s312
      %s334 = sphi 0, %s336
      %s337 = sphi 0, %s334
      %s338 = sphi 0, %s337
      %s354 = sphi 0, %s338
      %s360 = sphi 0, %s362
      %s363 = sphi 0, %s360
      %s364 = sphi 0, %s363
      %s380 = sphi 0, %s364
      %s386 = sphi 0, %s388
      %s389 = sphi 0, %s386
      %s390 = sphi 0, %s389
      %s406 = sphi 0, %s390
      %s412 = sphi 0, %s414
      %s415 = sphi 0, %s412
      %s416 = sphi 0, %s415
      %s432 = sphi 0, %s416
    $region4: #{roberta_forward.1} parent=1 // loop_header_branch
      %29 = sbr.rel (%p27) target = $region8
    $region5: #{roberta_forward.1} parent=1 // loop_body
      %s31 = ssub.s32 %s26, 1
      %s32 = ssub.s32 %s26, 2
      %s39 = sadd.s32 1, %s34
      %p40 = scmp.ge.s32.totalorder %s39, 2
      %s41 = scalar_select %p40, 0, %s39
      %s42 = sadd.s32 1, %s33
      %s43 = scalar_select %p40, %s42, %s33
      %p44 = scmp.ge.s32.totalorder %s43, 2
      %s45 = scalar_select %p44, 0, %s43
      %s46 = ssub.s32 %s33, %s45
      %p47 = scmp.eq.s32.totalorder %s46, 0
      %s49 = sadd.s32 %s48, 1
      %s50 = scalar_select %p47, %s48, %s49
      %p53 = pneg %p47
      %p54 = scmp.eq.s32.totalorder %s26, 3
      %p55 = por %p53, %p54
      %p56 = scmp.ne.s32.totalorder %s48, %s51
      %p57 = scmp.eq.s32.totalorder %s26, 0
      %p58 = por %p56, %p57
      %p59 = scmp.ne.s32.totalorder %s48, %s51
      %p60 = scmp.eq.s32.totalorder %s31, 3
      %p61 = por %p59, %p60
      %p62 = scmp.ne.s32.totalorder %s51, %s52
      %p63 = scmp.eq.s32.totalorder %s31, 0
      %p64 = por %p62, %p63
      %p65 = scmp.ne.s32.totalorder %s51, %s52
      %p66 = scmp.eq.s32.totalorder %s32, 3
      %p67 = por %p65, %p66
      %p69 = scmp.ne.s32.totalorder %s52, %s68
      %p70 = scmp.eq.s32.totalorder %s32, 0
      %p71 = por %p69, %p70
      %s72 = ssub.s32 %s33, %s45
      %p73 = scmp.eq.s32.totalorder %s72, 0
      %s75 = sadd.s32 %s74, 1
      %s76 = scalar_select %p73, %s74, %s75
      %p79 = pneg %p73
      %p80 = scmp.eq.s32.totalorder %s26, 3
      %p81 = por %p79, %p80
      %p82 = scmp.ne.s32.totalorder %s74, %s77
      %p83 = scmp.eq.s32.totalorder %s26, 0
      %p84 = por %p82, %p83
      %p85 = scmp.ne.s32.totalorder %s74, %s77
      %p86 = scmp.eq.s32.totalorder %s31, 3
      %p87 = por %p85, %p86
      %p88 = scmp.ne.s32.totalorder %s77, %s78
      %p89 = scmp.eq.s32.totalorder %s31, 0
      %p90 = por %p88, %p89
      %p91 = scmp.ne.s32.totalorder %s77, %s78
      %p92 = scmp.eq.s32.totalorder %s32, 3
      %p93 = por %p91, %p92
      %p95 = scmp.ne.s32.totalorder %s78, %s94
      %p96 = scmp.eq.s32.totalorder %s32, 0
      %p97 = por %p95, %p96
      %s98 = ssub.s32 %s34, %s41
      %p99 = scmp.eq.s32.totalorder %s98, 0
      %s101 = sadd.s32 %s100, 1
      %s102 = scalar_select %p99, %s100, %s101
      %p105 = pneg %p99
      %p106 = scmp.eq.s32.totalorder %s26, 3
      %p107 = por %p105, %p106
      %p108 = scmp.ne.s32.totalorder %s100, %s103
      %p109 = scmp.eq.s32.totalorder %s26, 0
      %p110 = por %p108, %p109
      %p111 = scmp.ne.s32.totalorder %s100, %s103
      %p112 = scmp.eq.s32.totalorder %s31, 3
      %p113 = por %p111, %p112
      %p114 = scmp.ne.s32.totalorder %s103, %s104
      %p115 = scmp.eq.s32.totalorder %s31, 0
      %p116 = por %p114, %p115
      %p117 = scmp.ne.s32.totalorder %s103, %s104
      %p118 = scmp.eq.s32.totalorder %s32, 3
      %p119 = por %p117, %p118
      %p121 = scmp.ne.s32.totalorder %s104, %s120
      %p122 = scmp.eq.s32.totalorder %s32, 0
      %p123 = por %p121, %p122
      %s124 = ssub.s32 %s34, %s41
      %p125 = scmp.eq.s32.totalorder %s124, 0
      %s127 = sadd.s32 %s126, 1
      %s128 = scalar_select %p125, %s126, %s127
      %p131 = pneg %p125
      %p132 = scmp.eq.s32.totalorder %s26, 3
      %p133 = por %p131, %p132
      %p134 = scmp.ne.s32.totalorder %s126, %s129
      %p135 = scmp.eq.s32.totalorder %s26, 0
      %p136 = por %p134, %p135
      %p137 = scmp.ne.s32.totalorder %s126, %s129
      %p138 = scmp.eq.s32.totalorder %s31, 3
      %p139 = por %p137, %p138
      %p140 = scmp.ne.s32.totalorder %s129, %s130
      %p141 = scmp.eq.s32.totalorder %s31, 0
      %p142 = por %p140, %p141
      %p143 = scmp.ne.s32.totalorder %s129, %s130
      %p144 = scmp.eq.s32.totalorder %s32, 3
      %p145 = por %p143, %p144
      %p147 = scmp.ne.s32.totalorder %s130, %s146
      %p148 = scmp.eq.s32.totalorder %s32, 0
      %p149 = por %p147, %p148
      %s150 = ssub.s32 %s34, %s41
      %p151 = scmp.eq.s32.totalorder %s150, 0
      %s153 = sadd.s32 %s152, 1
      %s154 = scalar_select %p151, %s152, %s153
      %p157 = pneg %p151
      %p158 = scmp.eq.s32.totalorder %s26, 3
      %p159 = por %p157, %p158
      %p160 = scmp.ne.s32.totalorder %s152, %s155
      %p161 = scmp.eq.s32.totalorder %s26, 0
      %p162 = por %p160, %p161
      %p163 = scmp.ne.s32.totalorder %s152, %s155
      %p164 = scmp.eq.s32.totalorder %s31, 3
      %p165 = por %p163, %p164
      %p166 = scmp.ne.s32.totalorder %s155, %s156
      %p167 = scmp.eq.s32.totalorder %s31, 0
      %p168 = por %p166, %p167
      %p169 = scmp.ne.s32.totalorder %s155, %s156
      %p170 = scmp.eq.s32.totalorder %s32, 3
      %p171 = por %p169, %p170
      %p173 = scmp.ne.s32.totalorder %s156, %s172
      %p174 = scmp.eq.s32.totalorder %s32, 0
      %p175 = por %p173, %p174
      %s176 = ssub.s32 %s34, %s41
      %p177 = scmp.eq.s32.totalorder %s176, 0
      %s179 = sadd.s32 %s178, 1
      %s180 = scalar_select %p177, %s178, %s179
      %p183 = pneg %p177
      %p184 = scmp.eq.s32.totalorder %s26, 3
      %p185 = por %p183, %p184
      %p186 = scmp.ne.s32.totalorder %s178, %s181
      %p187 = scmp.eq.s32.totalorder %s26, 0
      %p188 = por %p186, %p187
      %p189 = scmp.ne.s32.totalorder %s178, %s181
      %p190 = scmp.eq.s32.totalorder %s31, 3
      %p191 = por %p189, %p190
      %p192 = scmp.ne.s32.totalorder %s181, %s182
      %p193 = scmp.eq.s32.totalorder %s31, 0
      %p194 = por %p192, %p193
      %p195 = scmp.ne.s32.totalorder %s181, %s182
      %p196 = scmp.eq.s32.totalorder %s32, 3
      %p197 = por %p195, %p196
      %p199 = scmp.ne.s32.totalorder %s182, %s198
      %p200 = scmp.eq.s32.totalorder %s32, 0
      %p201 = por %p199, %p200
      %s202 = ssub.s32 %s34, %s41
      %p203 = scmp.eq.s32.totalorder %s202, 0
      %s205 = sadd.s32 %s204, 1
      %s206 = scalar_select %p203, %s204, %s205
      %p209 = pneg %p203
      %p210 = scmp.eq.s32.totalorder %s26, 3
      %p211 = por %p209, %p210
      %p212 = scmp.ne.s32.totalorder %s204, %s207
      %p213 = scmp.eq.s32.totalorder %s26, 0
      %p214 = por %p212, %p213
      %p215 = scmp.ne.s32.totalorder %s204, %s207
      %p216 = scmp.eq.s32.totalorder %s31, 3
      %p217 = por %p215, %p216
      %p218 = scmp.ne.s32.totalorder %s207, %s208
      %p219 = scmp.eq.s32.totalorder %s31, 0
      %p220 = por %p218, %p219
      %p221 = scmp.ne.s32.totalorder %s207, %s208
      %p222 = scmp.eq.s32.totalorder %s32, 3
      %p223 = por %p221, %p222
      %p225 = scmp.ne.s32.totalorder %s208, %s224
      %p226 = scmp.eq.s32.totalorder %s32, 0
      %p227 = por %p225, %p226
      %s228 = ssub.s32 %s34, %s41
      %p229 = scmp.eq.s32.totalorder %s228, 0
      %s231 = sadd.s32 %s230, 1
      %s232 = scalar_select %p229, %s230, %s231
      %p235 = pneg %p229
      %p236 = scmp.eq.s32.totalorder %s26, 3
      %p237 = por %p235, %p236
      %p238 = scmp.ne.s32.totalorder %s230, %s233
      %p239 = scmp.eq.s32.totalorder %s26, 0
      %p240 = por %p238, %p239
      %p241 = scmp.ne.s32.totalorder %s230, %s233
      %p242 = scmp.eq.s32.totalorder %s31, 3
      %p243 = por %p241, %p242
      %p244 = scmp.ne.s32.totalorder %s233, %s234
      %p245 = scmp.eq.s32.totalorder %s31, 0
      %p246 = por %p244, %p245
      %p247 = scmp.ne.s32.totalorder %s233, %s234
      %p248 = scmp.eq.s32.totalorder %s32, 3
      %p249 = por %p247, %p248
      %p251 = scmp.ne.s32.totalorder %s234, %s250
      %p252 = scmp.eq.s32.totalorder %s32, 0
      %p253 = por %p251, %p252
      %s254 = ssub.s32 %s34, %s41
      %p255 = scmp.eq.s32.totalorder %s254, 0
      %s257 = sadd.s32 %s256, 1
      %s258 = scalar_select %p255, %s256, %s257
      %p261 = pneg %p255
      %p262 = scmp.eq.s32.totalorder %s26, 3
      %p263 = por %p261, %p262
      %p264 = scmp.ne.s32.totalorder %s256, %s259
      %p265 = scmp.eq.s32.totalorder %s26, 0
      %p266 = por %p264, %p265
      %p267 = scmp.ne.s32.totalorder %s256, %s259
      %p268 = scmp.eq.s32.totalorder %s31, 3
      %p269 = por %p267, %p268
      %p270 = scmp.ne.s32.totalorder %s259, %s260
      %p271 = scmp.eq.s32.totalorder %s31, 0
      %p272 = por %p270, %p271
      %p273 = scmp.ne.s32.totalorder %s259, %s260
      %p274 = scmp.eq.s32.totalorder %s32, 3
      %p275 = por %p273, %p274
      %p277 = scmp.ne.s32.totalorder %s260, %s276
      %p278 = scmp.eq.s32.totalorder %s32, 0
      %p279 = por %p277, %p278
      %s280 = ssub.s32 %s34, %s41
      %p281 = scmp.eq.s32.totalorder %s280, 0
      %s283 = sadd.s32 %s282, 1
      %s284 = scalar_select %p281, %s282, %s283
      %p287 = pneg %p281
      %p288 = scmp.eq.s32.totalorder %s26, 3
      %p289 = por %p287, %p288
      %p290 = scmp.ne.s32.totalorder %s282, %s285
      %p291 = scmp.eq.s32.totalorder %s26, 0
      %p292 = por %p290, %p291
      %p293 = scmp.ne.s32.totalorder %s282, %s285
      %p294 = scmp.eq.s32.totalorder %s31, 3
      %p295 = por %p293, %p294
      %p296 = scmp.ne.s32.totalorder %s285, %s286
      %p297 = scmp.eq.s32.totalorder %s31, 0
      %p298 = por %p296, %p297
      %p299 = scmp.ne.s32.totalorder %s285, %s286
      %p300 = scmp.eq.s32.totalorder %s32, 3
      %p301 = por %p299, %p300
      %p303 = scmp.ne.s32.totalorder %s286, %s302
      %p304 = scmp.eq.s32.totalorder %s32, 0
      %p305 = por %p303, %p304
      %s306 = ssub.s32 %s34, %s41
      %p307 = scmp.eq.s32.totalorder %s306, 0
      %s309 = sadd.s32 %s308, 1
      %s310 = scalar_select %p307, %s308, %s309
      %p313 = pneg %p307
      %p314 = scmp.eq.s32.totalorder %s26, 3
      %p315 = por %p313, %p314
      %p316 = scmp.ne.s32.totalorder %s308, %s311
      %p317 = scmp.eq.s32.totalorder %s26, 0
      %p318 = por %p316, %p317
      %p319 = scmp.ne.s32.totalorder %s308, %s311
      %p320 = scmp.eq.s32.totalorder %s31, 3
      %p321 = por %p319, %p320
      %p322 = scmp.ne.s32.totalorder %s311, %s312
      %p323 = scmp.eq.s32.totalorder %s31, 0
      %p324 = por %p322, %p323
      %p325 = scmp.ne.s32.totalorder %s311, %s312
      %p326 = scmp.eq.s32.totalorder %s32, 3
      %p327 = por %p325, %p326
      %p329 = scmp.ne.s32.totalorder %s312, %s328
      %p330 = scmp.eq.s32.totalorder %s32, 0
      %p331 = por %p329, %p330
      %s332 = ssub.s32 %s34, %s41
      %p333 = scmp.eq.s32.totalorder %s332, 0
      %s335 = sadd.s32 %s334, 1
      %s336 = scalar_select %p333, %s334, %s335
      %p339 = pneg %p333
      %p340 = scmp.eq.s32.totalorder %s26, 3
      %p341 = por %p339, %p340
      %p342 = scmp.ne.s32.totalorder %s334, %s337
      %p343 = scmp.eq.s32.totalorder %s26, 0
      %p344 = por %p342, %p343
      %p345 = scmp.ne.s32.totalorder %s334, %s337
      %p346 = scmp.eq.s32.totalorder %s31, 3
      %p347 = por %p345, %p346
      %p348 = scmp.ne.s32.totalorder %s337, %s338
      %p349 = scmp.eq.s32.totalorder %s31, 0
      %p350 = por %p348, %p349
      %p351 = scmp.ne.s32.totalorder %s337, %s338
      %p352 = scmp.eq.s32.totalorder %s32, 3
      %p353 = por %p351, %p352
      %p355 = scmp.ne.s32.totalorder %s338, %s354
      %p356 = scmp.eq.s32.totalorder %s32, 0
      %p357 = por %p355, %p356
      %s358 = ssub.s32 %s34, %s41
      %p359 = scmp.eq.s32.totalorder %s358, 0
      %s361 = sadd.s32 %s360, 1
      %s362 = scalar_select %p359, %s360, %s361
      %p365 = pneg %p359
      %p366 = scmp.eq.s32.totalorder %s26, 3
      %p367 = por %p365, %p366
      %p368 = scmp.ne.s32.totalorder %s360, %s363
      %p369 = scmp.eq.s32.totalorder %s26, 0
      %p370 = por %p368, %p369
      %p371 = scmp.ne.s32.totalorder %s360, %s363
      %p372 = scmp.eq.s32.totalorder %s31, 3
      %p373 = por %p371, %p372
      %p374 = scmp.ne.s32.totalorder %s363, %s364
      %p375 = scmp.eq.s32.totalorder %s31, 0
      %p376 = por %p374, %p375
      %p377 = scmp.ne.s32.totalorder %s363, %s364
      %p378 = scmp.eq.s32.totalorder %s32, 3
      %p379 = por %p377, %p378
      %p381 = scmp.ne.s32.totalorder %s364, %s380
      %p382 = scmp.eq.s32.totalorder %s32, 0
      %p383 = por %p381, %p382
      %s384 = ssub.s32 %s34, %s41
      %p385 = scmp.eq.s32.totalorder %s384, 0
      %s387 = sadd.s32 %s386, 1
      %s388 = scalar_select %p385, %s386, %s387
      %p391 = pneg %p385
      %p392 = scmp.eq.s32.totalorder %s26, 3
      %p393 = por %p391, %p392
      %p394 = scmp.ne.s32.totalorder %s386, %s389
      %p395 = scmp.eq.s32.totalorder %s26, 0
      %p396 = por %p394, %p395
      %p397 = scmp.ne.s32.totalorder %s386, %s389
      %p398 = scmp.eq.s32.totalorder %s31, 3
      %p399 = por %p397, %p398
      %p400 = scmp.ne.s32.totalorder %s389, %s390
      %p401 = scmp.eq.s32.totalorder %s31, 0
      %p402 = por %p400, %p401
      %p403 = scmp.ne.s32.totalorder %s389, %s390
      %p404 = scmp.eq.s32.totalorder %s32, 3
      %p405 = por %p403, %p404
      %p407 = scmp.ne.s32.totalorder %s390, %s406
      %p408 = scmp.eq.s32.totalorder %s32, 0
      %p409 = por %p407, %p408
      %s410 = ssub.s32 %s33, %s45
      %p411 = scmp.eq.s32.totalorder %s410, 0
      %s413 = sadd.s32 %s412, 1
      %s414 = scalar_select %p411, %s412, %s413
      %p417 = pneg %p411
      %p418 = scmp.eq.s32.totalorder %s26, 3
      %p419 = por %p417, %p418
      %p420 = scmp.ne.s32.totalorder %s412, %s415
      %p421 = scmp.eq.s32.totalorder %s26, 0
      %p422 = por %p420, %p421
      %p423 = scmp.ne.s32.totalorder %s412, %s415
      %p424 = scmp.eq.s32.totalorder %s31, 3
      %p425 = por %p423, %p424
      %p426 = scmp.ne.s32.totalorder %s415, %s416
      %p427 = scmp.eq.s32.totalorder %s31, 0
      %p428 = por %p426, %p427
      %p429 = scmp.ne.s32.totalorder %s415, %s416
      %p430 = scmp.eq.s32.totalorder %s32, 3
      %p431 = por %p429, %p430
      %p433 = scmp.ne.s32.totalorder %s416, %s432
      %p434 = scmp.eq.s32.totalorder %s32, 0
      %p435 = por %p433, %p434
      %p436 = scmp.le.s32.totalorder 1, %s26
      %p437 = scmp.lt.s32.totalorder %s26, 5
      %p438 = pnand %p436, %p437
      %p439 = pneg %p438
      // Predicated region
      $region9: #{roberta_forward.1} parent=5 // pred_check
        _
      $region10: #{roberta_forward.1} parent=5 // pred_check_branch
        %441 = sbr.rel (%p438) target = $region12
      $region11: #{roberta_forward.1} parent=5 // pred_region
        %s442 = ssub.s32 %s26, 1
      $region12: #{roberta_forward.1} parent=5 // pred_fallthru
        _
      %p443 = scmp.lt.s32.totalorder %s26, 4
      // Predicated region
      $region13: #{roberta_forward.1} parent=5 // pred_check
        %p444 = pneg %p443
      $region14: #{roberta_forward.1} parent=5 // pred_check_branch
        %446 = sbr.rel (%p444) target = $region16
      $region15: #{roberta_forward.1} parent=5 // pred_region
        // Predicated region
        $region17: #{roberta_forward.1} parent=15 // pred_check
          %p447 = pneg %p58
        $region18: #{roberta_forward.1} parent=15 // pred_check_branch
          %449 = sbr.rel (%p447) target = $region20
        $region19: #{roberta_forward.1} parent=15 // pred_region
          %p450 = scmp.lt.s32.totalorder %s33, 1
          %s451 = scalar_select %p450, %s33, 1
          %s452 = smul.addr %s451, 4
          %s453 = scalar_lea.vmem %s0, %s452
        $region20: #{roberta_forward.1} parent=15 // pred_fallthru
          _
        // Predicated region
        $region21: #{roberta_forward.1} parent=15 // pred_check
          %p454 = pneg %p84
        $region22: #{roberta_forward.1} parent=15 // pred_check_branch
          %456 = sbr.rel (%p454) target = $region24
        $region23: #{roberta_forward.1} parent=15 // pred_region
          %p457 = scmp.lt.s32.totalorder %s33, 1
          %s458 = scalar_select %p457, %s33, 1
          %s459 = scalar_lea.vmem %s1, %s458
        $region24: #{roberta_forward.1} parent=15 // pred_fallthru
          _
        // Predicated region
        $region25: #{roberta_forward.1} parent=15 // pred_check
          %p460 = pneg %p110
        $region26: #{roberta_forward.1} parent=15 // pred_check_branch
          %462 = sbr.rel (%p460) target = $region28
        $region27: #{roberta_forward.1} parent=15 // pred_region
          %s463 = sand.u32 %s100, 1
          %s464 = scalar_lea.sflag [#allocation3], %s463
          %s465 = sand.u32 %s100, 1
          %s466 = smul.addr %s465, 192
          %s467 = scalar_lea.vmem [#allocation2], %s466
          %469 = vsyncadd %s464, 0
          %s470 = smul.addr %s34, 48
          %s471 = smul.addr %s470, 4
          %s472 = scalar_lea.hbm %s2, %s471
          %s473 = sshll.u32 %s472, 4
          %s474 = int_to_ptr.hbm [resolvable:$true] %s473
          %s475 = sshll.u32 %s467, 4
          %s476 = int_to_ptr.vmem [resolvable:$true] %s475
          %481 = dma.hbm_to_vmem [thread:$0]  %s474, 3072, %s476, %s464, 192, 192, 12
        $region28: #{roberta_forward.1} parent=15 // pred_fallthru
          _
        // Predicated region
        $region29: #{roberta_forward.1} parent=15 // pred_check
          %p482 = pneg %p136
        $region30: #{roberta_forward.1} parent=15 // pred_check_branch
          %484 = sbr.rel (%p482) target = $region32
        $region31: #{roberta_forward.1} parent=15 // pred_region
          %p485 = scmp.lt.s32.totalorder %s34, 1
          %s486 = scalar_select %p485, %s34, 1
          %s487 = smul.addr %s486, 3
          %s488 = scalar_lea.vmem %s3, %s487
        $region32: #{roberta_forward.1} parent=15 // pred_fallthru
          _
        // Predicated region
        $region33: #{roberta_forward.1} parent=15 // pred_check
          %p489 = pneg %p162
        $region34: #{roberta_forward.1} parent=15 // pred_check_branch
          %491 = sbr.rel (%p489) target = $region36
        $region35: #{roberta_forward.1} parent=15 // pred_region
          %p492 = scmp.lt.s32.totalorder %s34, 1
          %s493 = scalar_select %p492, %s34, 1
          %s494 = smul.addr %s493, 16
          %s495 = smul.addr %s494, 4
          %s496 = scalar_lea.vmem %s4, %s495
        $region36: #{roberta_forward.1} parent=15 // pred_fallthru
          _
        // Predicated region
        $region37: #{roberta_forward.1} parent=15 // pred_check
          %p497 = pneg %p188
        $region38: #{roberta_forward.1} parent=15 // pred_check_branch
          %499 = sbr.rel (%p497) target = $region40
        $region39: #{roberta_forward.1} parent=15 // pred_region
          %p500 = scmp.lt.s32.totalorder %s34, 1
          %s501 = scalar_select %p500, %s34, 1
          %s502 = scalar_lea.vmem %s5, %s501
        $region40: #{roberta_forward.1} parent=15 // pred_fallthru
          _
        // Predicated region
        $region41: #{roberta_forward.1} parent=15 // pred_check
          %p503 = pneg %p214
        $region42: #{roberta_forward.1} parent=15 // pred_check_branch
          %505 = sbr.rel (%p503) target = $region44
        $region43: #{roberta_forward.1} parent=15 // pred_region
          %p506 = scmp.lt.s32.totalorder %s34, 1
          %s507 = scalar_select %p506, %s34, 1
          %s508 = scalar_lea.vmem %s6, %s507
        $region44: #{roberta_forward.1} parent=15 // pred_fallthru
          _
        // Predicated region
        $region45: #{roberta_forward.1} parent=15 // pred_check
          %p509 = pneg %p240
        $region46: #{roberta_forward.1} parent=15 // pred_check_branch
          %511 = sbr.rel (%p509) target = $region48
        $region47: #{roberta_forward.1} parent=15 // pred_region
          %p512 = scmp.lt.s32.totalorder %s34, 1
          %s513 = scalar_select %p512, %s34, 1
          %s514 = scalar_lea.vmem %s7, %s513
        $region48: #{roberta_forward.1} parent=15 // pred_fallthru
          _
        // Predicated region
        $region49: #{roberta_forward.1} parent=15 // pred_check
          %p515 = pneg %p266
        $region50: #{roberta_forward.1} parent=15 // pred_check_branch
          %517 = sbr.rel (%p515) target = $region52
        $region51: #{roberta_forward.1} parent=15 // pred_region
          %p518 = scmp.lt.s32.totalorder %s34, 1
          %s519 = scalar_select %p518, %s34, 1
          %s520 = smul.addr %s519, 32
          %s521 = smul.addr %s520, 4
          %s522 = scalar_lea.vmem %s8, %s521
        $region52: #{roberta_forward.1} parent=15 // pred_fallthru
          _
        // Predicated region
        $region53: #{roberta_forward.1} parent=15 // pred_check
          %p523 = pneg %p292
        $region54: #{roberta_forward.1} parent=15 // pred_check_branch
          %525 = sbr.rel (%p523) target = $region56
        $region55: #{roberta_forward.1} parent=15 // pred_region
          %p526 = scmp.lt.s32.totalorder %s34, 1
          %s527 = scalar_select %p526, %s34, 1
          %s528 = smul.addr %s527, 2
          %s529 = scalar_lea.vmem %s9, %s528
        $region56: #{roberta_forward.1} parent=15 // pred_fallthru
          _
        // Predicated region
        $region57: #{roberta_forward.1} parent=15 // pred_check
          %p530 = pneg %p318
        $region58: #{roberta_forward.1} parent=15 // pred_check_branch
          %532 = sbr.rel (%p530) target = $region60
        $region59: #{roberta_forward.1} parent=15 // pred_region
          %s533 = sand.u32 %s308, 1
          %s534 = scalar_lea.sflag [#allocation5], %s533
          %s535 = sand.u32 %s308, 1
          %s536 = smul.addr %s535, 128
          %s537 = scalar_lea.vmem [#allocation4], %s536
          %539 = vsyncadd %s534, 0
          %s540 = smul.addr %s34, 32
          %s541 = smul.addr %s540, 4
          %s542 = scalar_lea.hbm %s10, %s541
          %s543 = sshll.u32 %s542, 4
          %s544 = int_to_ptr.hbm [resolvable:$true] %s543
          %s545 = sshll.u32 %s537, 4
          %s546 = int_to_ptr.vmem [resolvable:$true] %s545
          %551 = dma.hbm_to_vmem [thread:$0]  %s544, 2048, %s546, %s534, 64, 64, 4
        $region60: #{roberta_forward.1} parent=15 // pred_fallthru
          _
        // Predicated region
        $region61: #{roberta_forward.1} parent=15 // pred_check
          %p552 = pneg %p344
        $region62: #{roberta_forward.1} parent=15 // pred_check_branch
          %554 = sbr.rel (%p552) target = $region64
        $region63: #{roberta_forward.1} parent=15 // pred_region
          %p555 = scmp.lt.s32.totalorder %s34, 1
          %s556 = scalar_select %p555, %s34, 1
          %s557 = scalar_lea.vmem %s11, %s556
        $region64: #{roberta_forward.1} parent=15 // pred_fallthru
          _
        // Predicated region
        $region65: #{roberta_forward.1} parent=15 // pred_check
          %p558 = pneg %p370
        $region66: #{roberta_forward.1} parent=15 // pred_check_branch
          %560 = sbr.rel (%p558) target = $region68
        $region67: #{roberta_forward.1} parent=15 // pred_region
          %p561 = scmp.lt.s32.totalorder %s34, 1
          %s562 = scalar_select %p561, %s34, 1
          %s563 = scalar_lea.vmem %s12, %s562
        $region68: #{roberta_forward.1} parent=15 // pred_fallthru
          _
        // Predicated region
        $region69: #{roberta_forward.1} parent=15 // pred_check
          %p564 = pneg %p396
        $region70: #{roberta_forward.1} parent=15 // pred_check_branch
          %566 = sbr.rel (%p564) target = $region72
        $region71: #{roberta_forward.1} parent=15 // pred_region
          %p567 = scmp.lt.s32.totalorder %s34, 1
          %s568 = scalar_select %p567, %s34, 1
          %s569 = scalar_lea.vmem %s13, %s568
        $region72: #{roberta_forward.1} parent=15 // pred_fallthru
          _
      $region16: #{roberta_forward.1} parent=5 // pred_fallthru
        _
      %p570 = scmp.le.s32.totalorder 1, %s26
      %p571 = scmp.lt.s32.totalorder %s26, 5
      %p572 = pnand %p570, %p571
      %p573 = pneg %p572
      // Predicated region
      $region73: #{roberta_forward.1} parent=5 // pred_check
        _
      $region74: #{roberta_forward.1} parent=5 // pred_check_branch
        %575 = sbr.rel (%p572) target = $region76
      $region75: #{roberta_forward.1} parent=5 // pred_region
        %s576 = ssub.s32 %s26, 1
        %s577 = sand.u32 %s103, 1
        %s578 = scalar_lea.sflag [#allocation3], %s577
        %s579 = sand.u32 %s103, 1
        %s580 = smul.addr %s579, 192
        %s581 = scalar_lea.vmem [#allocation2], %s580
        // Predicated region
        $region77: #{roberta_forward.1} parent=75 // pred_check
          %p582 = pneg %p116
        $region78: #{roberta_forward.1} parent=75 // pred_check_branch
          %584 = sbr.rel (%p582) target = $region80
        $region79: #{roberta_forward.1} parent=75 // pred_region
          %586 = dma.done %s578, 3072
        $region80: #{roberta_forward.1} parent=75 // pred_fallthru
          _
        %s587 = sand.u32 %s311, 1
        %s588 = scalar_lea.sflag [#allocation5], %s587
        %s589 = sand.u32 %s311, 1
        %s590 = smul.addr %s589, 128
        %s591 = scalar_lea.vmem [#allocation4], %s590
        // Predicated region
        $region81: #{roberta_forward.1} parent=75 // pred_check
          %p592 = pneg %p324
        $region82: #{roberta_forward.1} parent=75 // pred_check_branch
          %594 = sbr.rel (%p592) target = $region84
        $region83: #{roberta_forward.1} parent=75 // pred_region
          %596 = dma.done %s588, 2048
        $region84: #{roberta_forward.1} parent=75 // pred_fallthru
          _
        %p597 = scmp.lt.s32.totalorder %s35, 1
        %s598 = scalar_select %p597, %s35, 1
        %s599 = smul.addr %s598, 4
        %s600 = scalar_lea.vmem %s0, %s599
        %p601 = pneg %p64
        %p602 = pneg %p61
        %p603 = scmp.lt.s32.totalorder %s35, 1
        %s604 = scalar_select %p603, %s35, 1
        %s605 = scalar_lea.vmem %s1, %s604
        %p606 = pneg %p90
        %p607 = pneg %p87
        %s608 = sand.u32 %s103, 1
        %s609 = scalar_lea.sflag [#allocation3], %s608
        %s610 = sand.u32 %s103, 1
        %s611 = smul.addr %s610, 192
        %s612 = scalar_lea.vmem [#allocation2], %s611
        %p613 = pneg %p116
        %p614 = pneg %p113
        %p615 = scmp.lt.s32.totalorder %s36, 1
        %s616 = scalar_select %p615, %s36, 1
        %s617 = smul.addr %s616, 3
        %s618 = scalar_lea.vmem %s3, %s617
        %p619 = pneg %p142
        %p620 = pneg %p139
        %p621 = scmp.lt.s32.totalorder %s36, 1
        %s622 = scalar_select %p621, %s36, 1
        %s623 = smul.addr %s622, 16
        %s624 = smul.addr %s623, 4
        %s625 = scalar_lea.vmem %s4, %s624
        %p626 = pneg %p168
        %p627 = pneg %p165
        %p628 = scmp.lt.s32.totalorder %s36, 1
        %s629 = scalar_select %p628, %s36, 1
        %s630 = scalar_lea.vmem %s5, %s629
        %p631 = pneg %p194
        %p632 = pneg %p191
        %p633 = scmp.lt.s32.totalorder %s36, 1
        %s634 = scalar_select %p633, %s36, 1
        %s635 = scalar_lea.vmem %s6, %s634
        %p636 = pneg %p220
        %p637 = pneg %p217
        %p638 = scmp.lt.s32.totalorder %s36, 1
        %s639 = scalar_select %p638, %s36, 1
        %s640 = scalar_lea.vmem %s7, %s639
        %p641 = pneg %p246
        %p642 = pneg %p243
        %p643 = scmp.lt.s32.totalorder %s36, 1
        %s644 = scalar_select %p643, %s36, 1
        %s645 = smul.addr %s644, 32
        %s646 = smul.addr %s645, 4
        %s647 = scalar_lea.vmem %s8, %s646
        %p648 = pneg %p272
        %p649 = pneg %p269
        %p650 = scmp.lt.s32.totalorder %s36, 1
        %s651 = scalar_select %p650, %s36, 1
        %s652 = smul.addr %s651, 2
        %s653 = scalar_lea.vmem %s9, %s652
        %p654 = pneg %p298
        %p655 = pneg %p295
        %s656 = sand.u32 %s311, 1
        %s657 = scalar_lea.sflag [#allocation5], %s656
        %s658 = sand.u32 %s311, 1
        %s659 = smul.addr %s658, 128
        %s660 = scalar_lea.vmem [#allocation4], %s659
        %p661 = pneg %p324
        %p662 = pneg %p321
        %p663 = scmp.lt.s32.totalorder %s36, 1
        %s664 = scalar_select %p663, %s36, 1
        %s665 = scalar_lea.vmem %s11, %s664
        %p666 = pneg %p350
        %p667 = pneg %p347
        %p668 = scmp.lt.s32.totalorder %s36, 1
        %s669 = scalar_select %p668, %s36, 1
        %s670 = scalar_lea.vmem %s12, %s669
        %p671 = pneg %p376
        %p672 = pneg %p373
        %p673 = scmp.lt.s32.totalorder %s36, 1
        %s674 = scalar_select %p673, %s36, 1
        %s675 = scalar_lea.vmem %s13, %s674
        %p676 = pneg %p402
        %p677 = pneg %p399
        %p678 = pneg %p428
        %p679 = pneg %p425
        %p680 = scmp.lt.s32.totalorder %s35, 1
        %s681 = scalar_select %p680, %s35, 1
        %s682 = smul.addr %s681, 4
        %s683 = scalar_lea.vmem %s14, %s682
        %p684 = scmp.lt.s32.totalorder %s35, 1
        %s685 = scalar_select %p684, %s35, 1
        %s686 = smul.addr %s685, 4
        %s687 = scalar_lea.vmem %s0, %s686
        %p688 = scmp.lt.s32.totalorder %s35, 1
        %s689 = scalar_select %p688, %s35, 1
        %s690 = scalar_lea.vmem %s1, %s689
        %p691 = scmp.lt.s32.totalorder %s36, 1
        %s692 = scalar_select %p691, %s36, 1
        %s693 = smul.addr %s692, 3
        %s694 = scalar_lea.vmem %s3, %s693
        %p695 = scmp.lt.s32.totalorder %s36, 1
        %s696 = scalar_select %p695, %s36, 1
        %s697 = smul.addr %s696, 16
        %s698 = smul.addr %s697, 4
        %s699 = scalar_lea.vmem %s4, %s698
        %p700 = scmp.lt.s32.totalorder %s36, 1
        %s701 = scalar_select %p700, %s36, 1
        %s702 = scalar_lea.vmem %s5, %s701
        %p703 = scmp.lt.s32.totalorder %s36, 1
        %s704 = scalar_select %p703, %s36, 1
        %s705 = scalar_lea.vmem %s6, %s704
        %p706 = scmp.lt.s32.totalorder %s36, 1
        %s707 = scalar_select %p706, %s36, 1
        %s708 = scalar_lea.vmem %s7, %s707
        %p709 = scmp.lt.s32.totalorder %s36, 1
        %s710 = scalar_select %p709, %s36, 1
        %s711 = smul.addr %s710, 32
        %s712 = smul.addr %s711, 4
        %s713 = scalar_lea.vmem %s8, %s712
        %p714 = scmp.lt.s32.totalorder %s36, 1
        %s715 = scalar_select %p714, %s36, 1
        %s716 = smul.addr %s715, 2
        %s717 = scalar_lea.vmem %s9, %s716
        %p718 = scmp.lt.s32.totalorder %s36, 1
        %s719 = scalar_select %p718, %s36, 1
        %s720 = scalar_lea.vmem %s11, %s719
        %p721 = scmp.lt.s32.totalorder %s36, 1
        %s722 = scalar_select %p721, %s36, 1
        %s723 = scalar_lea.vmem %s12, %s722
        %p724 = scmp.lt.s32.totalorder %s36, 1
        %s725 = scalar_select %p724, %s36, 1
        %s726 = scalar_lea.vmem %s13, %s725
        %p727 = scmp.lt.s32.totalorder %s35, 1
        %s728 = scalar_select %p727, %s35, 1
        %s729 = smul.addr %s728, 4
        %s730 = scalar_lea.vmem %s14, %s729
        %p732 = scmp.eq.s32.totalorder %s36, 0
        // Predicated region
        $region85: #{roberta_forward.1} parent=75 // pred_check
          %p733 = pneg %p732
        $region86: #{roberta_forward.1} parent=75 // pred_check_branch
          %735 = sbr.rel (%p733) target = $region88
        $region87: #{roberta_forward.1} parent=75 // pred_region
          %v736 = vld [vmem:[%s687] sm:$0xf]
          %737 = vst [vmem:[%s730] sm:$0xf] %v736
        $region88: #{roberta_forward.1} parent=75 // pred_fallthru
          _
        %v738 = vld [vmem:[%s730] sm:$0xf]
        %v739 = vld [vmem:[%s581] sm:$0xff]
        %v740 = vld [vmem:[%s581 + $0x8] sm:$0xf]
        %v741 = vld [vmem:[%s581 + $0xc] sm:$0xff]
        %v742 = vld [vmem:[%s581 + $0x14] sm:$0xf]
        %v743 = vld [vmem:[%s581 + $0x18] sm:$0xff]
        %v744 = vld [vmem:[%s581 + $0x20] sm:$0xf]
        %v745 = vld [vmem:[%s581 + $0x24] sm:$0xff]
        %v746 = vld [vmem:[%s581 + $0x2c] sm:$0xf]
        %v747 = vld [vmem:[%s581 + $0x30] sm:$0xff]
        %v748 = vld [vmem:[%s581 + $0x38] sm:$0xf]
        %v749 = vld [vmem:[%s581 + $0x3c] sm:$0xff]
        %v750 = vld [vmem:[%s581 + $0x44] sm:$0xf]
        %v751 = vld [vmem:[%s581 + $0x48] sm:$0xff]
        %v752 = vld [vmem:[%s581 + $0x50] sm:$0xf]
        %v753 = vld [vmem:[%s581 + $0x54] sm:$0xff]
        %v754 = vld [vmem:[%s581 + $0x5c] sm:$0xf]
        %v755 = vld [vmem:[%s581 + $0x60] sm:$0xff]
        %v756 = vld [vmem:[%s581 + $0x68] sm:$0xf]
        %v757 = vld [vmem:[%s581 + $0x6c] sm:$0xff]
        %v758 = vld [vmem:[%s581 + $0x74] sm:$0xf]
        %v759 = vld [vmem:[%s581 + $0x78] sm:$0xff]
        %v760 = vld [vmem:[%s581 + $0x80] sm:$0xf]
        %v761 = vld [vmem:[%s581 + $0x84] sm:$0xff]
        %v762 = vld [vmem:[%s581 + $0x8c] sm:$0xf]
        %v763 = vld [vmem:[%s581 + $0x90] sm:$0xff]
        %v764 = vld [vmem:[%s581 + $0x98] sm:$0xf]
        %v765 = vld [vmem:[%s581 + $0x9c] sm:$0xff]
        %v766 = vld [vmem:[%s581 + $0xa4] sm:$0xf]
        %v767 = vld [vmem:[%s581 + $0xa8] sm:$0xff]
        %v768 = vld [vmem:[%s581 + $0xb0] sm:$0xf]
        %v769 = vld [vmem:[%s581 + $0xb4] sm:$0xff]
        %v770 = vld [vmem:[%s581 + $0xbc] sm:$0xf]
        %v771 = vld [vmem:[%s694] sm:$0x7]
        %v773 = vperm.slane %v771, 0
        %v774 = vperm.slane %v771, 1
        %v775 = vperm.slane %v771, 2
        %v811 = vunpack.c.l.b16 %v739
        %v812 = vunpack.c.h.b16 %v739
        %v813 = vunpack.c.l.b16 %v740
        %v814 = vunpack.c.l.b16 %v741
        %v815 = vunpack.c.h.b16 %v741
        %v816 = vunpack.c.l.b16 %v742
        %v817 = vunpack.c.l.b16 %v743
        %v818 = vunpack.c.h.b16 %v743
        %v819 = vunpack.c.l.b16 %v744
        %v820 = vunpack.c.l.b16 %v745
        %v821 = vunpack.c.h.b16 %v745
        %v822 = vunpack.c.l.b16 %v746
        %v823 = vunpack.c.l.b16 %v747
        %v824 = vunpack.c.h.b16 %v747
        %v825 = vunpack.c.l.b16 %v748
        %v826 = vunpack.c.l.b16 %v749
        %v827 = vunpack.c.h.b16 %v749
        %v828 = vunpack.c.l.b16 %v750
        %v829 = vunpack.c.l.b16 %v751
        %v830 = vunpack.c.h.b16 %v751
        %v831 = vunpack.c.l.b16 %v752
        %v832 = vunpack.c.l.b16 %v753
        %v833 = vunpack.c.h.b16 %v753
        %v834 = vunpack.c.l.b16 %v754
        %v835 = vunpack.c.l.b16 %v755
        %v836 = vunpack.c.h.b16 %v755
        %v837 = vunpack.c.l.b16 %v756
        %v838 = vunpack.c.l.b16 %v757
        %v839 = vunpack.c.h.b16 %v757
        %v840 = vunpack.c.l.b16 %v758
        %v841 = vunpack.c.l.b16 %v759
        %v842 = vunpack.c.h.b16 %v759
        %v843 = vunpack.c.l.b16 %v760
        %v844 = vunpack.c.l.b16 %v761
        %v845 = vunpack.c.h.b16 %v761
        %v846 = vunpack.c.l.b16 %v762
        %v847 = vunpack.c.l.b16 %v763
        %v848 = vunpack.c.h.b16 %v763
        %v849 = vunpack.c.l.b16 %v764
        %v850 = vunpack.c.l.b16 %v765
        %v851 = vunpack.c.h.b16 %v765
        %v852 = vunpack.c.l.b16 %v766
        %v853 = vunpack.c.l.b16 %v767
        %v854 = vunpack.c.h.b16 %v767
        %v855 = vunpack.c.l.b16 %v768
        %v856 = vunpack.c.l.b16 %v769
        %v857 = vunpack.c.h.b16 %v769
        %v858 = vunpack.c.l.b16 %v770
        %v859 = vpack.c.b16 %v814, %v811
        %v860 = vpack.c.b16 %v815, %v812
        %v861 = vpack.c.b16 %v816, %v813
        %v862 = vpack.c.b16 %v820, %v817
        %v863 = vpack.c.b16 %v821, %v818
        %v864 = vpack.c.b16 %v822, %v819
        %v865 = vpack.c.b16 %v826, %v823
        %v866 = vpack.c.b16 %v827, %v824
        %v867 = vpack.c.b16 %v828, %v825
        %v868 = vpack.c.b16 %v832, %v829
        %v869 = vpack.c.b16 %v833, %v830
        %v870 = vpack.c.b16 %v834, %v831
        %v871 = vpack.c.b16 %v838, %v835
        %v872 = vpack.c.b16 %v839, %v836
        %v873 = vpack.c.b16 %v840, %v837
        %v874 = vpack.c.b16 %v844, %v841
        %v875 = vpack.c.b16 %v845, %v842
        %v876 = vpack.c.b16 %v846, %v843
        %v877 = vpack.c.b16 %v850, %v847
        %v878 = vpack.c.b16 %v851, %v848
        %v879 = vpack.c.b16 %v852, %v849
        %v880 = vpack.c.b16 %v856, %v853
        %v881 = vpack.c.b16 %v857, %v854
        %v882 = vpack.c.b16 %v858, %v855
        %907 = vmatpush.bf16.msra.mxu0 %v880
        %908 = vmatpush.bf16.msra.mxu0 %v877
        %909 = vmatpush.bf16.msra.mxu0 %v874
        %910 = vmatpush.bf16.msra.mxu0 %v871
        %911 = vmatpush.bf16.msra.mxu0 %v868
        %912 = vmatpush.bf16.msra.mxu0 %v865
        %913 = vmatpush.bf16.msra.mxu0 %v862
        %914 = vmatpush.bf16.msra.mxu0 %v859
        %915 = vmatmul.bf16.gmra.mxu0 %v738
        %v916 = vpop.f32.mrf.mxu0
        %v917 = vadd.f32 %v773, %v916
        %v918 = vpop.f32.mrf.mxu0
        %919 = vdwg.mxu0
        %920 = vmatpush.bf16.msra.mxu0 %v881
        %921 = vmatpush.bf16.msra.mxu0 %v878
        %922 = vmatpush.bf16.msra.mxu0 %v875
        %923 = vmatpush.bf16.msra.mxu0 %v872
        %924 = vmatpush.bf16.msra.mxu0 %v869
        %925 = vmatpush.bf16.msra.mxu0 %v866
        %926 = vmatpush.bf16.msra.mxu0 %v863
        %927 = vmatpush.bf16.msra.mxu0 %v860
        %928 = vmatmul.bf16.gmra.mxu0 %v738
        %v929 = vpop.f32.mrf.mxu0
        %v930 = vadd.f32 %v774, %v929
        %v931 = vpop.f32.mrf.mxu0
        %932 = vdwg.mxu0
        %933 = vmatpush.bf16.msra.mxu0 %v882
        %934 = vmatpush.bf16.msra.mxu0 %v879
        %935 = vmatpush.bf16.msra.mxu0 %v876
        %936 = vmatpush.bf16.msra.mxu0 %v873
        %937 = vmatpush.bf16.msra.mxu0 %v870
        %938 = vmatpush.bf16.msra.mxu0 %v867
        %939 = vmatpush.bf16.msra.mxu0 %v864
        %940 = vmatpush.bf16.msra.mxu0 %v861
        %941 = vmatmul.bf16.gmra.mxu0 %v738
        %v942 = vpop.f32.mrf.mxu0
        %v943 = vadd.f32 %v775, %v942
        %v944 = vpop.f32.mrf.mxu0
        %945 = vdwg.mxu0
        %v946 = vpack.c.bf16 %v930, %v917
        %v947 = vpack.c.bf16 %v943, %v943
        %949 = vrot.lane.b32.xlu0 %v946, 96
        %v950 = vpop.permute.xlu0 %949
        %951 = vrot.lane.b32.xlu0 %v946, 64
        %v952 = vpop.permute.xlu0 %951
        %953 = vrot.lane.b32.xlu0 %v946, 32
        %v954 = vpop.permute.xlu0 %953
        %v955 = vrot.slane %v946, 4
        %v956 = vrot.slane %v950, 4
        %v957 = vrot.slane %v952, 4
        %v958 = vrot.slane %v954, 4
        %960 = vrot.lane.b32.xlu0 %v947, 96
        %v961 = vpop.permute.xlu0 %960
        %962 = vrot.lane.b32.xlu0 %v947, 64
        %v963 = vpop.permute.xlu0 %962
        %964 = vrot.lane.b32.xlu0 %v947, 32
        %v965 = vpop.permute.xlu0 %964
        %v966 = vld [vmem:[%s690] sm:$0x1]
        %v968 = vperm.slane %v966, 0
        %vm970 = vcmask 261120
        %v972 = vsel %vm970, %v946, 0
        %v975 = vsel %vm970, %v955, 0
        %977 = vmatpush.bf16.xpose.msra.mxu0 0
        %978 = vmatpush.bf16.xpose.msra.mxu0 0
        %979 = vmatpush.bf16.xpose.msra.mxu0 0
        %980 = vmatpush.bf16.xpose.msra.mxu0 0
        %981 = vmatpush.bf16.xpose.msra.mxu0 0
        %982 = vmatpush.bf16.xpose.msra.mxu0 0
        %983 = vmatpush.bf16.xpose.msra.mxu0 0
        %984 = vmatpush.bf16.xpose.msra.mxu0 %v975
        %985 = vmatmul.bf16.gmra.mxu0 %v972
        %v986 = vpop.f32.mrf.mxu0
        %v987 = vadd.f32 %v968, %v986
        %v988 = vpop.f32.mrf.mxu0
        %989 = vdwg.mxu0
        %v991 = vsel %vm970, %v950, 0
        %v994 = vsel %vm970, %v956, 0
        %996 = vmatpush.bf16.xpose.msra.mxu0 0
        %997 = vmatpush.bf16.xpose.msra.mxu0 0
        %998 = vmatpush.bf16.xpose.msra.mxu0 0
        %999 = vmatpush.bf16.xpose.msra.mxu0 0
        %1000 = vmatpush.bf16.xpose.msra.mxu0 0
        %1001 = vmatpush.bf16.xpose.msra.mxu0 0
        %1002 = vmatpush.bf16.xpose.msra.mxu0 0
        %1003 = vmatpush.bf16.xpose.msra.mxu0 %v994
        %1004 = vmatmul.bf16.gmra.mxu0 %v991
        %v1005 = vpop.f32.mrf.mxu0
        %v1006 = vadd.f32 %v968, %v1005
        %v1007 = vpop.f32.mrf.mxu0
        %1008 = vdwg.mxu0
        %v1010 = vsel %vm970, %v952, 0
        %v1013 = vsel %vm970, %v957, 0
        %1015 = vmatpush.bf16.xpose.msra.mxu0 0
        %1016 = vmatpush.bf16.xpose.msra.mxu0 0
        %1017 = vmatpush.bf16.xpose.msra.mxu0 0
        %1018 = vmatpush.bf16.xpose.msra.mxu0 0
        %1019 = vmatpush.bf16.xpose.msra.mxu0 0
        %1020 = vmatpush.bf16.xpose.msra.mxu0 0
        %1021 = vmatpush.bf16.xpose.msra.mxu0 0
        %1022 = vmatpush.bf16.xpose.msra.mxu0 %v1013
        %1023 = vmatmul.bf16.gmra.mxu0 %v1010
        %v1024 = vpop.f32.mrf.mxu0
        %v1025 = vadd.f32 %v968, %v1024
        %v1026 = vpop.f32.mrf.mxu0
        %1027 = vdwg.mxu0
        %v1029 = vsel %vm970, %v954, 0
        %v1032 = vsel %vm970, %v958, 0
        %1034 = vmatpush.bf16.xpose.msra.mxu0 0
        %1035 = vmatpush.bf16.xpose.msra.mxu0 0
        %1036 = vmatpush.bf16.xpose.msra.mxu0 0
        %1037 = vmatpush.bf16.xpose.msra.mxu0 0
        %1038 = vmatpush.bf16.xpose.msra.mxu0 0
        %1039 = vmatpush.bf16.xpose.msra.mxu0 0
        %1040 = vmatpush.bf16.xpose.msra.mxu0 0
        %1041 = vmatpush.bf16.xpose.msra.mxu0 %v1032
        %1042 = vmatmul.bf16.gmra.mxu0 %v1029
        %v1043 = vpop.f32.mrf.mxu0
        %v1044 = vadd.f32 %v968, %v1043
        %v1045 = vpop.f32.mrf.mxu0
        %1046 = vdwg.mxu0
        %vm1047 = vcmask 64512
        %v1048 = vsel %vm1047, %v987, -inf
        %1049 = vmax.xlane.f32.xlu0 %v1048
        %v1050 = vpop.xlane.xlu0 %1049
        %v1051 = vsel %vm1047, %v1006, -inf
        %1052 = vmax.xlane.f32.xlu0 %v1051
        %v1053 = vpop.xlane.xlu0 %1052
        %v1054 = vsel %vm1047, %v1025, -inf
        %1055 = vmax.xlane.f32.xlu0 %v1054
        %v1056 = vpop.xlane.xlu0 %1055
        %v1057 = vsel %vm1047, %v1044, -inf
        %1058 = vmax.xlane.f32.xlu0 %v1057
        %v1059 = vpop.xlane.xlu0 %1058
        %v1060 = vsub.f32 %v987, %v1050
        %v1061 = vsub.f32 %v1006, %v1053
        %v1062 = vsub.f32 %v1025, %v1056
        %v1063 = vsub.f32 %v1044, %v1059
        %v1064 = vmul.f32 %v1060, 1.442695
        %v1065 = vpow.pop %v1064
        %v1066 = vmul.f32 %v1061, 1.442695
        %v1067 = vpow.pop %v1066
        %v1068 = vmul.f32 %v1062, 1.442695
        %v1069 = vpow.pop %v1068
        %v1070 = vmul.f32 %v1063, 1.442695
        %v1071 = vpow.pop %v1070
        %v1072 = vsel %vm1047, %v1065, 0.0
        %1073 = vadd.xlane.f32.xlu0 %v1072
        %v1074 = vpop.xlane.xlu0 %1073
        %v1075 = vsel %vm1047, %v1067, 0.0
        %1076 = vadd.xlane.f32.xlu0 %v1075
        %v1077 = vpop.xlane.xlu0 %1076
        %v1078 = vsel %vm1047, %v1069, 0.0
        %1079 = vadd.xlane.f32.xlu0 %v1078
        %v1080 = vpop.xlane.xlu0 %1079
        %v1081 = vsel %vm1047, %v1071, 0.0
        %1082 = vadd.xlane.f32.xlu0 %v1081
        %v1083 = vpop.xlane.xlu0 %1082
        %v1084 = vrcp.pop %v1074
        %v1085 = vrcp.pop %v1077
        %v1086 = vrcp.pop %v1080
        %v1087 = vrcp.pop %v1083
        %v1088 = vmul.f32 %v1065, %v1084
        %v1089 = vmul.f32 %v1067, %v1085
        %v1090 = vmul.f32 %v1069, %v1086
        %v1091 = vmul.f32 %v1071, %v1087
        %v1092 = vpack.c.bf16 %v1088, %v1088
        %v1093 = vpack.c.bf16 %v1089, %v1089
        %v1094 = vpack.c.bf16 %v1090, %v1090
        %v1095 = vpack.c.bf16 %v1091, %v1091
        %v1097 = vsel %vm1047, %v1092, 0
        %vm1099 = vcmask 1043456
        %v1101 = vsel %vm1099, %v947, 0
        %1103 = vmatpush.bf16.msra.mxu0 0
        %1104 = vmatpush.bf16.msra.mxu0 0
        %1105 = vmatpush.bf16.msra.mxu0 0
        %1106 = vmatpush.bf16.msra.mxu0 0
        %1107 = vmatpush.bf16.msra.mxu0 0
        %1108 = vmatpush.bf16.msra.mxu0 0
        %1109 = vmatpush.bf16.msra.mxu0 0
        %1110 = vmatpush.bf16.msra.mxu0 %v1101
        %1111 = vmatmul.bf16.gmra.mxu0 %v1097
        %v1112 = vpop.f32.mrf.mxu0
        %v1113 = vadd.f32 0.0, %v1112
        %v1114 = vpop.f32.mrf.mxu0
        %1115 = vdwg.mxu0
        %v1117 = vsel %vm1047, %v1093, 0
        %v1120 = vsel %vm1099, %v961, 0
        %1122 = vmatpush.bf16.msra.mxu0 0
        %1123 = vmatpush.bf16.msra.mxu0 0
        %1124 = vmatpush.bf16.msra.mxu0 0
        %1125 = vmatpush.bf16.msra.mxu0 0
        %1126 = vmatpush.bf16.msra.mxu0 0
        %1127 = vmatpush.bf16.msra.mxu0 0
        %1128 = vmatpush.bf16.msra.mxu0 0
        %1129 = vmatpush.bf16.msra.mxu0 %v1120
        %1130 = vmatmul.bf16.gmra.mxu0 %v1117
        %v1131 = vpop.f32.mrf.mxu0
        %v1132 = vadd.f32 0.0, %v1131
        %v1133 = vpop.f32.mrf.mxu0
        %1134 = vdwg.mxu0
        %v1136 = vsel %vm1047, %v1094, 0
        %v1139 = vsel %vm1099, %v963, 0
        %1141 = vmatpush.bf16.msra.mxu0 0
        %1142 = vmatpush.bf16.msra.mxu0 0
        %1143 = vmatpush.bf16.msra.mxu0 0
        %1144 = vmatpush.bf16.msra.mxu0 0
        %1145 = vmatpush.bf16.msra.mxu0 0
        %1146 = vmatpush.bf16.msra.mxu0 0
        %1147 = vmatpush.bf16.msra.mxu0 0
        %1148 = vmatpush.bf16.msra.mxu0 %v1139
        %1149 = vmatmul.bf16.gmra.mxu0 %v1136
        %v1150 = vpop.f32.mrf.mxu0
        %v1151 = vadd.f32 0.0, %v1150
        %v1152 = vpop.f32.mrf.mxu0
        %1153 = vdwg.mxu0
        %v1155 = vsel %vm1047, %v1095, 0
        %v1158 = vsel %vm1099, %v965, 0
        %1160 = vmatpush.bf16.msra.mxu0 0
        %1161 = vmatpush.bf16.msra.mxu0 0
        %1162 = vmatpush.bf16.msra.mxu0 0
        %1163 = vmatpush.bf16.msra.mxu0 0
        %1164 = vmatpush.bf16.msra.mxu0 0
        %1165 = vmatpush.bf16.msra.mxu0 0
        %1166 = vmatpush.bf16.msra.mxu0 0
        %1167 = vmatpush.bf16.msra.mxu0 %v1158
        %1168 = vmatmul.bf16.gmra.mxu0 %v1155
        %v1169 = vpop.f32.mrf.mxu0
        %v1170 = vadd.f32 0.0, %v1169
        %v1171 = vpop.f32.mrf.mxu0
        %1172 = vdwg.mxu0
        %v1173 = vpack.c.bf16 %v1113, %v1113
        %v1174 = vpack.c.bf16 %v1132, %v1132
        %v1175 = vpack.c.bf16 %v1151, %v1151
        %v1176 = vpack.c.bf16 %v1170, %v1170
        %v1178 = vunpack.c.l.b16 %v1174
        %v1179 = vpack.c.b16 %v1178, %v1178
        %1180 = vrot.lane.b32.xlu0 %v1179, 32
        %v1181 = vpop.permute.xlu0 %1180
        %v1183 = vunpack.c.l.b16 %v1175
        %v1184 = vpack.c.b16 %v1183, %v1183
        %1185 = vrot.lane.b32.xlu0 %v1184, 64
        %v1186 = vpop.permute.xlu0 %1185
        %v1188 = vunpack.c.l.b16 %v1176
        %v1189 = vpack.c.b16 %v1188, %v1188
        %1190 = vrot.lane.b32.xlu0 %v1189, 96
        %v1191 = vpop.permute.xlu0 %1190
        %v1194 = vsel %vm970, %v1173, %v1181
        %vm1195 = vcmask 523264
        %v1197 = vsel %vm1195, %v1194, %v1186
        %vm1198 = vcmask 785408
        %v1200 = vsel %vm1198, %v1197, %v1191
        %v1202 = vld [vmem:[%s699] sm:$0xf]
        %v1203 = vld [vmem:[%s699 + $0x4] sm:$0xf]
        %v1204 = vld [vmem:[%s699 + $0x8] sm:$0xf]
        %v1205 = vld [vmem:[%s699 + $0xc] sm:$0xf]
        %v1206 = vld [vmem:[%s699 + $0x10] sm:$0xf]
        %v1207 = vld [vmem:[%s699 + $0x14] sm:$0xf]
        %v1208 = vld [vmem:[%s699 + $0x18] sm:$0xf]
        %v1209 = vld [vmem:[%s699 + $0x1c] sm:$0xf]
        %v1210 = vld [vmem:[%s699 + $0x20] sm:$0xf]
        %v1211 = vld [vmem:[%s699 + $0x24] sm:$0xf]
        %v1212 = vld [vmem:[%s699 + $0x28] sm:$0xf]
        %v1213 = vld [vmem:[%s699 + $0x2c] sm:$0xf]
        %v1214 = vld [vmem:[%s699 + $0x30] sm:$0xf]
        %v1215 = vld [vmem:[%s699 + $0x34] sm:$0xf]
        %v1216 = vld [vmem:[%s699 + $0x38] sm:$0xf]
        %v1217 = vld [vmem:[%s699 + $0x3c] sm:$0xf]
        %v1218 = vld [vmem:[%s702] sm:$0x1]
        %v1220 = vperm.slane %v1218, 0
        %v1238 = vunpack.c.l.b16 %v1202
        %v1239 = vunpack.c.l.b16 %v1203
        %v1240 = vunpack.c.l.b16 %v1204
        %v1241 = vunpack.c.l.b16 %v1205
        %v1242 = vunpack.c.l.b16 %v1206
        %v1243 = vunpack.c.l.b16 %v1207
        %v1244 = vunpack.c.l.b16 %v1208
        %v1245 = vunpack.c.l.b16 %v1209
        %v1246 = vunpack.c.l.b16 %v1210
        %v1247 = vunpack.c.l.b16 %v1211
        %v1248 = vunpack.c.l.b16 %v1212
        %v1249 = vunpack.c.l.b16 %v1213
        %v1250 = vunpack.c.l.b16 %v1214
        %v1251 = vunpack.c.l.b16 %v1215
        %v1252 = vunpack.c.l.b16 %v1216
        %v1253 = vunpack.c.l.b16 %v1217
        %v1254 = vpack.c.b16 %v1239, %v1238
        %v1255 = vpack.c.b16 %v1241, %v1240
        %v1256 = vpack.c.b16 %v1243, %v1242
        %v1257 = vpack.c.b16 %v1245, %v1244
        %v1258 = vpack.c.b16 %v1247, %v1246
        %v1259 = vpack.c.b16 %v1249, %v1248
        %v1260 = vpack.c.b16 %v1251, %v1250
        %v1261 = vpack.c.b16 %v1253, %v1252
        %1270 = vmatpush.bf16.msra.mxu0 %v1261
        %1271 = vmatpush.bf16.msra.mxu0 %v1260
        %1272 = vmatpush.bf16.msra.mxu0 %v1259
        %1273 = vmatpush.bf16.msra.mxu0 %v1258
        %1274 = vmatpush.bf16.msra.mxu0 %v1257
        %1275 = vmatpush.bf16.msra.mxu0 %v1256
        %1276 = vmatpush.bf16.msra.mxu0 %v1255
        %1277 = vmatpush.bf16.msra.mxu0 %v1254
        %1278 = vmatmul.bf16.gmra.mxu0 %v1200
        %v1279 = vpop.f32.mrf.mxu0
        %v1280 = vadd.f32 %v1220, %v1279
        %v1281 = vpop.f32.mrf.mxu0
        %1282 = vdwg.mxu0
        %v1283 = vunpack.c.l.bf16 %v738
        %v1284 = vadd.f32 %v1283, %v1280
        %v1285 = vld [vmem:[%s705] sm:$0x1]
        %v1286 = vld [vmem:[%s708] sm:$0x1]
        %1287 = vadd.xlane.f32.xlu0 %v1284
        %v1288 = vpop.xlane.xlu0 %1287
        %v1289 = vrcp.pop 128.0
        %v1290 = vmul.f32 128.0, %v1289
        %v1291 = vsub.f32 1.0, %v1290
        %v1292 = vmul.f32 %v1289, %v1291
        %v1293 = vadd.f32 %v1289, %v1292
        %vm1294 = vweird.f32 %v1289
        %v1295 = vsel %vm1294, %v1289, %v1293
        %v1296 = vmul.f32 %v1288, %v1295
        %v1297 = vsub.f32 %v1284, %v1296
        %v1298 = vmul.f32 %v1297, %v1297
        %1299 = vadd.xlane.f32.xlu0 %v1298
        %v1300 = vpop.xlane.xlu0 %1299
        %v1301 = vmul.f32 %v1300, %v1295
        %v1302 = vadd.f32 %v1301, 1e-05
        %v1303 = vrsqrt.pop %v1302
        %v1304 = vmul.f32 %v1303, %v1302
        %v1305 = vmul.f32 %v1304, %v1303
        %v1306 = vmul.f32 0.5, %v1305
        %v1307 = vsub.f32 1.5, %v1306
        %v1308 = vmul.f32 %v1303, %v1307
        %vm1309 = vweird.f32 %v1302
        %vm1310 = vweird.f32 %v1303
        %vm1311 = vmor %vm1309, %vm1310
        %v1312 = vsel %vm1311, %v1303, %v1308
        %v1313 = vmul.f32 %v1297, %v1312
        %v1315 = vperm.slane %v1285, 0
        %v1317 = vmul.f32 %v1313, %v1315
        %v1319 = vperm.slane %v1286, 0
        %v1321 = vadd.f32 %v1317, %v1319
        %v1322 = vpack.c.bf16 %v1321, %v1321
        %v1323 = vld [vmem:[%s713] sm:$0xff]
        %v1324 = vld [vmem:[%s713 + $0x8] sm:$0xff]
        %v1325 = vld [vmem:[%s713 + $0x10] sm:$0xff]
        %v1326 = vld [vmem:[%s713 + $0x18] sm:$0xff]
        %v1327 = vld [vmem:[%s713 + $0x20] sm:$0xff]
        %v1328 = vld [vmem:[%s713 + $0x28] sm:$0xff]
        %v1329 = vld [vmem:[%s713 + $0x30] sm:$0xff]
        %v1330 = vld [vmem:[%s713 + $0x38] sm:$0xff]
        %v1331 = vld [vmem:[%s713 + $0x40] sm:$0xff]
        %v1332 = vld [vmem:[%s713 + $0x48] sm:$0xff]
        %v1333 = vld [vmem:[%s713 + $0x50] sm:$0xff]
        %v1334 = vld [vmem:[%s713 + $0x58] sm:$0xff]
        %v1335 = vld [vmem:[%s713 + $0x60] sm:$0xff]
        %v1336 = vld [vmem:[%s713 + $0x68] sm:$0xff]
        %v1337 = vld [vmem:[%s713 + $0x70] sm:$0xff]
        %v1338 = vld [vmem:[%s713 + $0x78] sm:$0xff]
        %v1339 = vld [vmem:[%s717] sm:$0x3]
        %v1341 = vperm.slane %v1339, 0
        %v1342 = vperm.slane %v1339, 1
        %v1361 = vunpack.c.l.b16 %v1323
        %v1362 = vunpack.c.h.b16 %v1323
        %v1363 = vunpack.c.l.b16 %v1324
        %v1364 = vunpack.c.h.b16 %v1324
        %v1365 = vunpack.c.l.b16 %v1325
        %v1366 = vunpack.c.h.b16 %v1325
        %v1367 = vunpack.c.l.b16 %v1326
        %v1368 = vunpack.c.h.b16 %v1326
        %v1369 = vunpack.c.l.b16 %v1327
        %v1370 = vunpack.c.h.b16 %v1327
        %v1371 = vunpack.c.l.b16 %v1328
        %v1372 = vunpack.c.h.b16 %v1328
        %v1373 = vunpack.c.l.b16 %v1329
        %v1374 = vunpack.c.h.b16 %v1329
        %v1375 = vunpack.c.l.b16 %v1330
        %v1376 = vunpack.c.h.b16 %v1330
        %v1377 = vunpack.c.l.b16 %v1331
        %v1378 = vunpack.c.h.b16 %v1331
        %v1379 = vunpack.c.l.b16 %v1332
        %v1380 = vunpack.c.h.b16 %v1332
        %v1381 = vunpack.c.l.b16 %v1333
        %v1382 = vunpack.c.h.b16 %v1333
        %v1383 = vunpack.c.l.b16 %v1334
        %v1384 = vunpack.c.h.b16 %v1334
        %v1385 = vunpack.c.l.b16 %v1335
        %v1386 = vunpack.c.h.b16 %v1335
        %v1387 = vunpack.c.l.b16 %v1336
        %v1388 = vunpack.c.h.b16 %v1336
        %v1389 = vunpack.c.l.b16 %v1337
        %v1390 = vunpack.c.h.b16 %v1337
        %v1391 = vunpack.c.l.b16 %v1338
        %v1392 = vunpack.c.h.b16 %v1338
        %v1393 = vpack.c.b16 %v1363, %v1361
        %v1394 = vpack.c.b16 %v1364, %v1362
        %v1395 = vpack.c.b16 %v1367, %v1365
        %v1396 = vpack.c.b16 %v1368, %v1366
        %v1397 = vpack.c.b16 %v1371, %v1369
        %v1398 = vpack.c.b16 %v1372, %v1370
        %v1399 = vpack.c.b16 %v1375, %v1373
        %v1400 = vpack.c.b16 %v1376, %v1374
        %v1401 = vpack.c.b16 %v1379, %v1377
        %v1402 = vpack.c.b16 %v1380, %v1378
        %v1403 = vpack.c.b16 %v1383, %v1381
        %v1404 = vpack.c.b16 %v1384, %v1382
        %v1405 = vpack.c.b16 %v1387, %v1385
        %v1406 = vpack.c.b16 %v1388, %v1386
        %v1407 = vpack.c.b16 %v1391, %v1389
        %v1408 = vpack.c.b16 %v1392, %v1390
        %1425 = vmatpush.bf16.msra.mxu0 %v1407
        %1426 = vmatpush.bf16.msra.mxu0 %v1405
        %1427 = vmatpush.bf16.msra.mxu0 %v1403
        %1428 = vmatpush.bf16.msra.mxu0 %v1401
        %1429 = vmatpush.bf16.msra.mxu0 %v1399
        %1430 = vmatpush.bf16.msra.mxu0 %v1397
        %1431 = vmatpush.bf16.msra.mxu0 %v1395
        %1432 = vmatpush.bf16.msra.mxu0 %v1393
        %1433 = vmatmul.bf16.gmra.mxu0 %v1322
        %v1434 = vpop.f32.mrf.mxu0
        %v1435 = vadd.f32 %v1341, %v1434
        %v1436 = vpop.f32.mrf.mxu0
        %1437 = vdwg.mxu0
        %1438 = vmatpush.bf16.msra.mxu0 %v1408
        %1439 = vmatpush.bf16.msra.mxu0 %v1406
        %1440 = vmatpush.bf16.msra.mxu0 %v1404
        %1441 = vmatpush.bf16.msra.mxu0 %v1402
        %1442 = vmatpush.bf16.msra.mxu0 %v1400
        %1443 = vmatpush.bf16.msra.mxu0 %v1398
        %1444 = vmatpush.bf16.msra.mxu0 %v1396
        %1445 = vmatpush.bf16.msra.mxu0 %v1394
        %1446 = vmatmul.bf16.gmra.mxu0 %v1322
        %v1447 = vpop.f32.mrf.mxu0
        %v1448 = vadd.f32 %v1342, %v1447
        %v1449 = vpop.f32.mrf.mxu0
        %1450 = vdwg.mxu0
        %v1451 = vmul.f32 %v1435, %v1435
        %v1452 = vmul.f32 %v1448, %v1448
        %v1453 = vmul.f32 %v1435, %v1451
        %v1454 = vmul.f32 %v1448, %v1452
        %v1455 = vmul.f32 %v1453, 0.044715
        %v1456 = vmul.f32 %v1454, 0.044715
        %v1457 = vadd.f32 %v1435, %v1455
        %v1458 = vadd.f32 %v1448, %v1456
        %v1459 = vmul.f32 %v1457, 0.7978846
        %v1460 = vmul.f32 %v1458, 0.7978846
        %v1461 = vtanh.pop %v1459
        %v1462 = vtanh.pop %v1460
        %v1463 = vadd.f32 %v1461, 1.0
        %v1464 = vadd.f32 %v1462, 1.0
        %v1465 = vmul.f32 %v1463, 0.5
        %v1466 = vmul.f32 %v1464, 0.5
        %v1467 = vmul.f32 %v1435, %v1465
        %v1468 = vmul.f32 %v1448, %v1466
        %v1469 = vpack.c.bf16 %v1467, %v1467
        %v1470 = vpack.c.bf16 %v1468, %v1468
        %v1471 = vld [vmem:[%s591] sm:$0xf]
        %v1472 = vld [vmem:[%s591 + $0x4] sm:$0xf]
        %v1473 = vld [vmem:[%s591 + $0x8] sm:$0xf]
        %v1474 = vld [vmem:[%s591 + $0xc] sm:$0xf]
        %v1475 = vld [vmem:[%s591 + $0x10] sm:$0xf]
        %v1476 = vld [vmem:[%s591 + $0x14] sm:$0xf]
        %v1477 = vld [vmem:[%s591 + $0x18] sm:$0xf]
        %v1478 = vld [vmem:[%s591 + $0x1c] sm:$0xf]
        %v1479 = vld [vmem:[%s591 + $0x20] sm:$0xf]
        %v1480 = vld [vmem:[%s591 + $0x24] sm:$0xf]
        %v1481 = vld [vmem:[%s591 + $0x28] sm:$0xf]
        %v1482 = vld [vmem:[%s591 + $0x2c] sm:$0xf]
        %v1483 = vld [vmem:[%s591 + $0x30] sm:$0xf]
        %v1484 = vld [vmem:[%s591 + $0x34] sm:$0xf]
        %v1485 = vld [vmem:[%s591 + $0x38] sm:$0xf]
        %v1486 = vld [vmem:[%s591 + $0x3c] sm:$0xf]
        %v1487 = vld [vmem:[%s591 + $0x40] sm:$0xf]
        %v1488 = vld [vmem:[%s591 + $0x44] sm:$0xf]
        %v1489 = vld [vmem:[%s591 + $0x48] sm:$0xf]
        %v1490 = vld [vmem:[%s591 + $0x4c] sm:$0xf]
        %v1491 = vld [vmem:[%s591 + $0x50] sm:$0xf]
        %v1492 = vld [vmem:[%s591 + $0x54] sm:$0xf]
        %v1493 = vld [vmem:[%s591 + $0x58] sm:$0xf]
        %v1494 = vld [vmem:[%s591 + $0x5c] sm:$0xf]
        %v1495 = vld [vmem:[%s591 + $0x60] sm:$0xf]
        %v1496 = vld [vmem:[%s591 + $0x64] sm:$0xf]
        %v1497 = vld [vmem:[%s591 + $0x68] sm:$0xf]
        %v1498 = vld [vmem:[%s591 + $0x6c] sm:$0xf]
        %v1499 = vld [vmem:[%s591 + $0x70] sm:$0xf]
        %v1500 = vld [vmem:[%s591 + $0x74] sm:$0xf]
        %v1501 = vld [vmem:[%s591 + $0x78] sm:$0xf]
        %v1502 = vld [vmem:[%s591 + $0x7c] sm:$0xf]
        %v1503 = vld [vmem:[%s720] sm:$0x1]
        %v1505 = vperm.slane %v1503, 0
        %v1539 = vunpack.c.l.b16 %v1471
        %v1540 = vunpack.c.l.b16 %v1472
        %v1541 = vunpack.c.l.b16 %v1473
        %v1542 = vunpack.c.l.b16 %v1474
        %v1543 = vunpack.c.l.b16 %v1475
        %v1544 = vunpack.c.l.b16 %v1476
        %v1545 = vunpack.c.l.b16 %v1477
        %v1546 = vunpack.c.l.b16 %v1478
        %v1547 = vunpack.c.l.b16 %v1479
        %v1548 = vunpack.c.l.b16 %v1480
        %v1549 = vunpack.c.l.b16 %v1481
        %v1550 = vunpack.c.l.b16 %v1482
        %v1551 = vunpack.c.l.b16 %v1483
        %v1552 = vunpack.c.l.b16 %v1484
        %v1553 = vunpack.c.l.b16 %v1485
        %v1554 = vunpack.c.l.b16 %v1486
        %v1555 = vunpack.c.l.b16 %v1487
        %v1556 = vunpack.c.l.b16 %v1488
        %v1557 = vunpack.c.l.b16 %v1489
        %v1558 = vunpack.c.l.b16 %v1490
        %v1559 = vunpack.c.l.b16 %v1491
        %v1560 = vunpack.c.l.b16 %v1492
        %v1561 = vunpack.c.l.b16 %v1493
        %v1562 = vunpack.c.l.b16 %v1494
        %v1563 = vunpack.c.l.b16 %v1495
        %v1564 = vunpack.c.l.b16 %v1496
        %v1565 = vunpack.c.l.b16 %v1497
        %v1566 = vunpack.c.l.b16 %v1498
        %v1567 = vunpack.c.l.b16 %v1499
        %v1568 = vunpack.c.l.b16 %v1500
        %v1569 = vunpack.c.l.b16 %v1501
        %v1570 = vunpack.c.l.b16 %v1502
        %v1571 = vpack.c.b16 %v1540, %v1539
        %v1572 = vpack.c.b16 %v1542, %v1541
        %v1573 = vpack.c.b16 %v1544, %v1543
        %v1574 = vpack.c.b16 %v1546, %v1545
        %v1575 = vpack.c.b16 %v1548, %v1547
        %v1576 = vpack.c.b16 %v1550, %v1549
        %v1577 = vpack.c.b16 %v1552, %v1551
        %v1578 = vpack.c.b16 %v1554, %v1553
        %v1579 = vpack.c.b16 %v1556, %v1555
        %v1580 = vpack.c.b16 %v1558, %v1557
        %v1581 = vpack.c.b16 %v1560, %v1559
        %v1582 = vpack.c.b16 %v1562, %v1561
        %v1583 = vpack.c.b16 %v1564, %v1563
        %v1584 = vpack.c.b16 %v1566, %v1565
        %v1585 = vpack.c.b16 %v1568, %v1567
        %v1586 = vpack.c.b16 %v1570, %v1569
        %1603 = vmatpush.bf16.msra.mxu0 %v1578
        %1604 = vmatpush.bf16.msra.mxu0 %v1577
        %1605 = vmatpush.bf16.msra.mxu0 %v1576
        %1606 = vmatpush.bf16.msra.mxu0 %v1575
        %1607 = vmatpush.bf16.msra.mxu0 %v1574
        %1608 = vmatpush.bf16.msra.mxu0 %v1573
        %1609 = vmatpush.bf16.msra.mxu0 %v1572
        %1610 = vmatpush.bf16.msra.mxu0 %v1571
        %1611 = vmatmul.bf16.gmra.mxu0 %v1469
        %v1612 = vpop.f32.mrf.mxu0
        %v1613 = vadd.f32 %v1505, %v1612
        %v1614 = vpop.f32.mrf.mxu0
        %1615 = vdwg.mxu0
        %1616 = vmatpush.bf16.msra.mxu0 %v1586
        %1617 = vmatpush.bf16.msra.mxu0 %v1585
        %1618 = vmatpush.bf16.msra.mxu0 %v1584
        %1619 = vmatpush.bf16.msra.mxu0 %v1583
        %1620 = vmatpush.bf16.msra.mxu0 %v1582
        %1621 = vmatpush.bf16.msra.mxu0 %v1581
        %1622 = vmatpush.bf16.msra.mxu0 %v1580
        %1623 = vmatpush.bf16.msra.mxu0 %v1579
        %1624 = vmatmul.bf16.gmra.mxu0 %v1470
        %v1625 = vpop.f32.mrf.mxu0
        %v1626 = vadd.f32 %v1613, %v1625
        %v1627 = vpop.f32.mrf.mxu0
        %1628 = vdwg.mxu0
        %v1629 = vadd.f32 %v1321, %v1626
        %v1630 = vld [vmem:[%s723] sm:$0x1]
        %v1631 = vld [vmem:[%s726] sm:$0x1]
        %1632 = vadd.xlane.f32.xlu0 %v1629
        %v1633 = vpop.xlane.xlu0 %1632
        %v1634 = vmul.f32 %v1633, %v1295
        %v1635 = vsub.f32 %v1629, %v1634
        %v1636 = vmul.f32 %v1635, %v1635
        %1637 = vadd.xlane.f32.xlu0 %v1636
        %v1638 = vpop.xlane.xlu0 %1637
        %v1639 = vmul.f32 %v1638, %v1295
        %v1640 = vadd.f32 %v1639, 1e-05
        %v1641 = vrsqrt.pop %v1640
        %v1642 = vmul.f32 %v1641, %v1640
        %v1643 = vmul.f32 %v1642, %v1641
        %v1644 = vmul.f32 0.5, %v1643
        %v1645 = vsub.f32 1.5, %v1644
        %v1646 = vmul.f32 %v1641, %v1645
        %vm1647 = vweird.f32 %v1640
        %vm1648 = vweird.f32 %v1641
        %vm1649 = vmor %vm1647, %vm1648
        %v1650 = vsel %vm1649, %v1641, %v1646
        %v1651 = vmul.f32 %v1635, %v1650
        %v1653 = vperm.slane %v1630, 0
        %v1655 = vmul.f32 %v1651, %v1653
        %v1657 = vperm.slane %v1631, 0
        %v1659 = vadd.f32 %v1655, %v1657
        %v1660 = vpack.c.bf16 %v1659, %v1659
        %1661 = vst [vmem:[%s730] sm:$0xf] %v1660
        %p1662 = scmp.lt.s32.totalorder %s35, 1
        %s1663 = scalar_select %p1662, %s35, 1
        %s1664 = smul.addr %s1663, 4
        %s1665 = scalar_lea.vmem %s14, %s1664
        // Predicated region
        $region89: #{roberta_forward.1} parent=75 // pred_check
          %p1666 = pneg %p425
        $region90: #{roberta_forward.1} parent=75 // pred_check_branch
          %1668 = sbr.rel (%p1666) target = $region92
        $region91: #{roberta_forward.1} parent=75 // pred_region
          _
        $region92: #{roberta_forward.1} parent=75 // pred_fallthru
          _
      $region76: #{roberta_forward.1} parent=5 // pred_fallthru
        _
      %p1669 = scmp.le.s32.totalorder 2, %s26
      // Predicated region
      $region93: #{roberta_forward.1} parent=5 // pred_check
        %p1670 = pneg %p1669
      $region94: #{roberta_forward.1} parent=5 // pred_check_branch
        %1672 = sbr.rel (%p1670) target = $region96
      $region95: #{roberta_forward.1} parent=5 // pred_region
        %s1673 = ssub.s32 %s26, 2
        // Predicated region
        $region97: #{roberta_forward.1} parent=95 // pred_check
          %p1674 = pneg %p431
        $region98: #{roberta_forward.1} parent=95 // pred_check_branch
          %1676 = sbr.rel (%p1674) target = $region100
        $region99: #{roberta_forward.1} parent=95 // pred_region
          %p1677 = scmp.lt.s32.totalorder %s37, 1
          %s1678 = scalar_select %p1677, %s37, 1
          %s1679 = smul.addr %s1678, 4
          %s1680 = scalar_lea.vmem %s14, %s1679
        $region100: #{roberta_forward.1} parent=95 // pred_fallthru
          _
      $region96: #{roberta_forward.1} parent=5 // pred_fallthru
        _
    $region6: #{roberta_forward.1} parent=1 // loop_footer
      %s30 = sadd.s32 1, %s26
    $region7: #{roberta_forward.1} parent=1 // loop_footer_branch
      %25 = sbr.rel target = $region3
    $region8: #{roberta_forward.1} parent=1 // loop_exit
      _
    %1681 = vsyncpa [#allocation3], 1
    %s1682 = scalar_lea.sflag [#allocation3], 1
    %1683 = vsyncpa %s1682, 1
    %1684 = vsyncpa [#allocation5], 1
    %s1685 = scalar_lea.sflag [#allocation5], 1
    %1686 = vsyncpa %s1685, 1

</llo_original>
